<compile_context>
chip_gen: v5e
topology: v5e:2x2
jax: 0.10.0
libtpu: 0.0.40
codegen_flags: <defaults>
</compile_context>

<pallas_src>
import functools

import jax
import jax.numpy as jnp
import numpy as np
from jax.experimental import pallas as pl
from jax.experimental.pallas import tpu as pltpu

EPS = 1e-5
CPAD = 128      # channel lane padding (lane width)
PADMAX = 16     # halo rows; = bf16 sublane tile, >= largest conv padding (3)


def resnet_block_kernel(expand, x_ref,
                        wx_ref, gx_ref, bex_ref,
                        wy_ref, gy_ref, bey_ref,
                        wz_ref, gz_ref, bez_ref,
                        *rest):
    # Layout inside the kernel: NLC (channels on lanes, length on sublanes).
    if expand:
        ws_ref, gs_ref, bes_ref, out_ref, buf_ref = rest
    else:
        gs_ref, bes_ref, out_ref, buf_ref = rest

    n, l, cpad = x_ref.shape
    nl = n * l

    # Zero only the halo rows of the staging buffer (they stay zero for every
    # conv stage); the valid region is fully overwritten at each staging.
    buf_ref[:, 0:PADMAX, :] = jnp.zeros((n, PADMAX, cpad), jnp.bfloat16)
    buf_ref[:, PADMAX + l:PADMAX + l + PADMAX, :] = jnp.zeros(
        (n, PADMAX, cpad), jnp.bfloat16)

    def conv(inp_bf16, w_ref):
        # inp_bf16: (n, l, cpad) bf16; w_ref: (K*cpad, cpad) bf16 (im2col layout).
        k_taps = w_ref.shape[0] // cpad
        pad = (k_taps - 1) // 2
        buf_ref[:, PADMAX:PADMAX + l, :] = inp_bf16
        taps = [buf_ref[:, PADMAX - pad + k:PADMAX - pad + k + l, :]
                for k in range(k_taps)]
        patch = jnp.concatenate(taps, axis=-1).reshape(nl, k_taps * cpad)
        # Single bf16 MXU matmul with f32 accumulation (conv bias dropped: it
        # cancels in the train-mode BN mean subtraction).
        return jnp.dot(patch, w_ref[...], preferred_element_type=jnp.float32)

    def batch_norm(acc_f32, g_ref, b_ref, relu):
        # Train-mode BatchNorm1d: per-channel stats over (N, L), biased var,
        # folded into one scale/shift pass (single sum + sum-of-squares sweep).
        inv_cnt = 1.0 / float(nl)
        mean = jnp.sum(acc_f32, axis=0, keepdims=True) * inv_cnt
        var = jnp.maximum(
            jnp.sum(acc_f32 * acc_f32, axis=0, keepdims=True) * inv_cnt
            - mean * mean, 0.0)
        scale = g_ref[...] * jax.lax.rsqrt(var + EPS)
        shift = b_ref[...] - mean * scale
        y = acc_f32 * scale + shift
        return jnp.maximum(y, 0.0) if relu else y

    x_bf = x_ref[...]                                               # bf16
    h = batch_norm(conv(x_bf, wx_ref), gx_ref, bex_ref, True)       # f32 (nl, c)
    h = batch_norm(conv(h.astype(jnp.bfloat16).reshape(n, l, cpad), wy_ref),
                   gy_ref, bey_ref, True)
    h = batch_norm(conv(h.astype(jnp.bfloat16).reshape(n, l, cpad), wz_ref),
                   gz_ref, bez_ref, False)

    if expand:
        sc = jnp.dot(x_bf.reshape(nl, cpad), ws_ref[...],
                     preferred_element_type=jnp.float32)
    else:
        # Identity shortcut: no matmul, BN is applied directly to x.
        sc = x_bf.reshape(nl, cpad).astype(jnp.float32)
    sc = batch_norm(sc, gs_ref, bes_ref, False)

    out_ref[...] = jnp.maximum(h + sc, 0.0).reshape(n, l, cpad).astype(out_ref.dtype)


def _pack_conv_weight(w):
    """(K, Cin, Cout) f32 -> im2col (K*CPAD, CPAD) bf16, zero-padded."""
    k, ci, co = w.shape
    wp = jnp.zeros((k, CPAD, CPAD), jnp.float32).at[:, :ci, :co].set(w)
    return wp.reshape(k * CPAD, CPAD).astype(jnp.bfloat16)


def _pack_channel_vec(v):
    """(Cout,) f32 -> (1, CPAD) f32, zero-padded (keeps pad channels at zero)."""
    v = v.reshape(1, -1)
    return jnp.zeros((1, CPAD), jnp.float32).at[:, :v.shape[1]].set(v)


def resnet_block(x_ncl, params, expand):
    """x_ncl: (N, C_in, L) float32 (PyTorch layout). Returns (N, C_out, L) f32."""
    n, cin, l = x_ncl.shape
    cout = params["wx"].shape[2]
    assert cin <= CPAD and cout <= CPAD

    # NCL -> NLC, lane-pad channels to 128, cast activations to bf16 for the MXU.
    x_nlc = jnp.transpose(x_ncl, (0, 2, 1)).astype(jnp.float32)
    x_pad = (jnp.zeros((n, l, CPAD), jnp.float32)
             .at[:, :, :cin].set(x_nlc).astype(jnp.bfloat16))

    args = [x_pad]
    for s in ("x", "y", "z"):
        # Conv biases intentionally NOT passed: they cancel under train-mode BN.
        args += [_pack_conv_weight(params["w" + s]),
                 _pack_channel_vec(params["g" + s]),
                 _pack_channel_vec(params["be" + s])]
    if expand:
        args.append(_pack_conv_weight(params["ws"]))
    args += [_pack_channel_vec(params["gs"]), _pack_channel_vec(params["bes"])]

    out_shape = jax.ShapeDtypeStruct((n, l, CPAD), jnp.float32)
    scratch = pltpu.VMEM((n, l + 2 * PADMAX, CPAD), jnp.bfloat16)

    # Explicit VMEM budget sized from the actual buffers (+headroom for
    # compiler temporaries: im2col patch, f32 intermediates).
    arg_bytes = sum(a.size * a.dtype.itemsize for a in args)
    out_bytes = n * l * CPAD * 4
    scr_bytes = n * (l + 2 * PADMAX) * CPAD * 2
    vmem_bytes = int(min(max(4 * (arg_bytes + out_bytes + scr_bytes), 8 << 20),
                         64 << 20))

    vmem = pl.BlockSpec(memory_space=pltpu.MemorySpace.VMEM)
    out_nlc = pl.pallas_call(
        functools.partial(resnet_block_kernel, expand),
        out_shape=out_shape,
        in_specs=[vmem] * len(args),
        out_specs=vmem,
        scratch_shapes=[scratch],
        compiler_params=pltpu.CompilerParams(vmem_limit_bytes=vmem_bytes),
    )(*args)
    # TODO(synk): for realistic SimTSC shapes (large N*L) add a grid over
    # (batch, length) tiles with a separate BN-statistics pass so v7x (64 MiB
    # VMEM, 2 TCs) can tile and megacore-parallelize; unnecessary at these sizes.
    return jnp.transpose(out_nlc[:, :, :cout], (0, 2, 1))


def init_params(key, cin, cout):
    """Deterministic synthetic parameters. Conv weights stored as (K, Cin, Cout)."""
    expand = cin < cout
    keys = iter(jax.random.split(key, 24))

    def rnd(shape, scale=0.1):
        return scale * jax.random.normal(next(keys), shape, dtype=jnp.float32)

    p = {}
    for name, (k, ci) in {"x": (7, cin), "y": (5, cout), "z": (3, cout)}.items():
        p["w" + name] = rnd((k, ci, cout))
        p["b" + name] = rnd((cout,))          # used by the reference only
    if expand:
        p["ws"] = rnd((1, cin, cout))
        p["bs"] = rnd((cout,))
    for name in ("x", "y", "z", "s"):
        p["g" + name] = 1.0 + rnd((cout,))    # BN gamma
        p["be" + name] = rnd((cout,))         # BN beta
    return p, expand


def ref_forward(x_ncl, p, expand):
    """Pure-JAX f32 reference mirroring the PyTorch forward (train-mode BN)."""
    def conv(x, w, b):
        k_taps = w.shape[0]
        pad = (k_taps - 1) // 2
        length = x.shape[2]
        xp = jnp.pad(x, ((0, 0), (0, 0), (pad, pad)))
        out = jnp.zeros((x.shape[0], w.shape[2], length), jnp.float32)
        for k in range(k_taps):
            out = out + jnp.einsum("ncl,cd->ndl", xp[:, :, k:k + length], w[k])
        return out + b.reshape(1, -1, 1)

    def bn(x, g, be):
        mean = jnp.mean(x, axis=(0, 2), keepdims=True)
        var = jnp.mean((x - mean) ** 2, axis=(0, 2), keepdims=True)
        return ((x - mean) / jnp.sqrt(var + EPS) * g.reshape(1, -1, 1)
                + be.reshape(1, -1, 1))

    out = jax.nn.relu(bn(conv(x_ncl, p["wx"], p["bx"]), p["gx"], p["bex"]))
    out = jax.nn.relu(bn(conv(out, p["wy"], p["by"]), p["gy"], p["bey"]))
    out = bn(conv(out, p["wz"], p["bz"]), p["gz"], p["bez"])
    sc = conv(x_ncl, p["ws"], p["bs"]) if expand else x_ncl
    sc = bn(sc, p["gs"], p["bes"])
    return jax.nn.relu(out + sc)


if __name__ == "__main__":
    N, C_IN, C_OUT, L = 2, 4, 8, 16
    key = jax.random.PRNGKey(0)
    k_x, k_p = jax.random.split(key)
    x = jax.random.normal(k_x, (N, C_IN, L), dtype=jnp.float32)  # PyTorch NCL input
    params, expand = init_params(k_p, C_IN, C_OUT)

    out = jax.block_until_ready(resnet_block(x, params, expand))
    ref = jax.block_until_ready(ref_forward(x, params, expand))

    assert out.shape == (N, C_OUT, L)
    # bf16 MXU inputs -> slightly looser tolerance than a pure-f32 comparison.
    np.testing.assert_allclose(np.asarray(out), np.asarray(ref), rtol=5e-2, atol=5e-2)
    # TODO(synk): BatchNorm running-stat updates (a training-time side effect) are
    # not reproduced; only the forward output is computed.
    print("KERNEL_OK")
</pallas_src>

<mosaic_0001>
module attributes {stable_mosaic.version = 11 : i64} {
  func.func @resnet_block_kernel(%arg0: memref<2x16x128xbf16, #tpu.memory_space<vmem>>, %arg1: memref<896x128xbf16, #tpu.memory_space<vmem>>, %arg2: memref<1x128xf32, #tpu.memory_space<vmem>>, %arg3: memref<1x128xf32, #tpu.memory_space<vmem>>, %arg4: memref<640x128xbf16, #tpu.memory_space<vmem>>, %arg5: memref<1x128xf32, #tpu.memory_space<vmem>>, %arg6: memref<1x128xf32, #tpu.memory_space<vmem>>, %arg7: memref<384x128xbf16, #tpu.memory_space<vmem>>, %arg8: memref<1x128xf32, #tpu.memory_space<vmem>>, %arg9: memref<1x128xf32, #tpu.memory_space<vmem>>, %arg10: memref<128x128xbf16, #tpu.memory_space<vmem>>, %arg11: memref<1x128xf32, #tpu.memory_space<vmem>>, %arg12: memref<1x128xf32, #tpu.memory_space<vmem>>, %arg13: memref<2x16x128xf32, #tpu.memory_space<vmem>>, %arg14: memref<2x48x128xbf16, #tpu.memory_space<vmem>>) attributes {dimension_semantics = [], scalar_prefetch = 0 : i64, scratch_operands = 1 : i64, tpu.core_type = #tpu.core_type<tc>} {
    %cst = arith.constant 0.000000e+00 : bf16
    %0 = vector.broadcast %cst : bf16 to vector<2x16x128xbf16>
    %c0 = arith.constant 0 : index
    %c0_0 = arith.constant 0 : index
    %c0_1 = arith.constant 0 : index
    %1 = vector.load %arg14[%c0, %c0_0, %c0_1] : memref<2x48x128xbf16, #tpu.memory_space<vmem>>, vector<2x16x128xbf16>
    tpu.vector_store %arg14[%c0, %c0_0, %c0_1], %0 {strides = array<i32>} : memref<2x48x128xbf16, #tpu.memory_space<vmem>>, vector<2x16x128xbf16>,
    %cst_2 = arith.constant 0.000000e+00 : bf16
    %2 = vector.broadcast %cst_2 : bf16 to vector<2x16x128xbf16>
    %c0_3 = arith.constant 0 : index
    %c32 = arith.constant 32 : index
    %c0_4 = arith.constant 0 : index
    %3 = vector.load %arg14[%c0_3, %c32, %c0_4] : memref<2x48x128xbf16, #tpu.memory_space<vmem>>, vector<2x16x128xbf16>
    tpu.vector_store %arg14[%c0_3, %c32, %c0_4], %2 {strides = array<i32>} : memref<2x48x128xbf16, #tpu.memory_space<vmem>>, vector<2x16x128xbf16>,
    %c0_5 = arith.constant 0 : index
    %c0_6 = arith.constant 0 : index
    %c0_7 = arith.constant 0 : index
    %4 = vector.load %arg0[%c0_5, %c0_6, %c0_7] : memref<2x16x128xbf16, #tpu.memory_space<vmem>>, vector<2x16x128xbf16>
    %c0_8 = arith.constant 0 : index
    %c16 = arith.constant 16 : index
    %c0_9 = arith.constant 0 : index
    %5 = vector.load %arg14[%c0_8, %c16, %c0_9] : memref<2x48x128xbf16, #tpu.memory_space<vmem>>, vector<2x16x128xbf16>
    tpu.vector_store %arg14[%c0_8, %c16, %c0_9], %4 {strides = array<i32>} : memref<2x48x128xbf16, #tpu.memory_space<vmem>>, vector<2x16x128xbf16>,
    %c0_10 = arith.constant 0 : index
    %c13 = arith.constant 13 : index
    %c0_11 = arith.constant 0 : index
    %6 = vector.load %arg14[%c0_10, %c13, %c0_11] : memref<2x48x128xbf16, #tpu.memory_space<vmem>>, vector<2x16x128xbf16>
    %c0_12 = arith.constant 0 : index
    %c14 = arith.constant 14 : index
    %c0_13 = arith.constant 0 : index
    %7 = vector.load %arg14[%c0_12, %c14, %c0_13] : memref<2x48x128xbf16, #tpu.memory_space<vmem>>, vector<2x16x128xbf16>
    %c0_14 = arith.constant 0 : index
    %c15 = arith.constant 15 : index
    %c0_15 = arith.constant 0 : index
    %8 = vector.load %arg14[%c0_14, %c15, %c0_15] : memref<2x48x128xbf16, #tpu.memory_space<vmem>>, vector<2x16x128xbf16>
    %c0_16 = arith.constant 0 : index
    %c16_17 = arith.constant 16 : index
    %c0_18 = arith.constant 0 : index
    %9 = vector.load %arg14[%c0_16, %c16_17, %c0_18] : memref<2x48x128xbf16, #tpu.memory_space<vmem>>, vector<2x16x128xbf16>
    %c0_19 = arith.constant 0 : index
    %c17 = arith.constant 17 : index
    %c0_20 = arith.constant 0 : index
    %10 = vector.load %arg14[%c0_19, %c17, %c0_20] : memref<2x48x128xbf16, #tpu.memory_space<vmem>>, vector<2x16x128xbf16>
    %c0_21 = arith.constant 0 : index
    %c18 = arith.constant 18 : index
    %c0_22 = arith.constant 0 : index
    %11 = vector.load %arg14[%c0_21, %c18, %c0_22] : memref<2x48x128xbf16, #tpu.memory_space<vmem>>, vector<2x16x128xbf16>
    %c0_23 = arith.constant 0 : index
    %c19 = arith.constant 19 : index
    %c0_24 = arith.constant 0 : index
    %12 = vector.load %arg14[%c0_23, %c19, %c0_24] : memref<2x48x128xbf16, #tpu.memory_space<vmem>>, vector<2x16x128xbf16>
    %13 = tpu.concatenate %6, %7, %8, %9, %10, %11, %12 in 2 : vector<2x16x128xbf16>, vector<2x16x128xbf16>, vector<2x16x128xbf16>, vector<2x16x128xbf16>, vector<2x16x128xbf16>, vector<2x16x128xbf16>, vector<2x16x128xbf16> -> vector<2x16x896xbf16>
    %14 = vector.shape_cast %13 : vector<2x16x896xbf16> to vector<32x896xbf16>
    %c0_25 = arith.constant 0 : index
    %c0_26 = arith.constant 0 : index
    %15 = vector.load %arg1[%c0_25, %c0_26] : memref<896x128xbf16, #tpu.memory_space<vmem>>, vector<896x128xbf16>
    %cst_27 = arith.constant dense<0.000000e+00> : vector<32x128xf32>
    %16 = tpu.matmul %14, %15, %cst_27 {dimension_numbers = #tpu.dot_dimension_numbers<[1], [0], [0], [1], [0, 0, 1, 1], [], []>} : vector<32x896xbf16>, vector<896x128xbf16>, vector<32x128xf32> -> vector<32x128xf32>
    %cst_28 = arith.constant dense<0.000000e+00> : vector<128xf32>
    %17 = vector.multi_reduction <add>, %16, %cst_28 [0] : vector<32x128xf32> to vector<128xf32>
    %18 = vector.shape_cast %17 : vector<128xf32> to vector<1x128xf32>
    %cst_29 = arith.constant 3.125000e-02 : f32
    %19 = vector.broadcast %cst_29 : f32 to vector<1x128xf32>
    %20 = arith.mulf %18, %19 : vector<1x128xf32>
    %21 = arith.mulf %16, %16 : vector<32x128xf32>
    %cst_30 = arith.constant dense<0.000000e+00> : vector<128xf32>
    %22 = vector.multi_reduction <add>, %21, %cst_30 [0] : vector<32x128xf32> to vector<128xf32>
    %23 = vector.shape_cast %22 : vector<128xf32> to vector<1x128xf32>
    %cst_31 = arith.constant 3.125000e-02 : f32
    %24 = vector.broadcast %cst_31 : f32 to vector<1x128xf32>
    %25 = arith.mulf %23, %24 : vector<1x128xf32>
    %26 = arith.mulf %20, %20 : vector<1x128xf32>
    %27 = arith.subf %25, %26 : vector<1x128xf32>
    %cst_32 = arith.constant 0.000000e+00 : f32
    %28 = vector.broadcast %cst_32 : f32 to vector<1x128xf32>
    %29 = arith.maximumf %27, %28 : vector<1x128xf32>
    %c0_33 = arith.constant 0 : index
    %c0_34 = arith.constant 0 : index
    %30 = vector.load %arg2[%c0_33, %c0_34] : memref<1x128xf32, #tpu.memory_space<vmem>>, vector<1x128xf32>
    %cst_35 = arith.constant 9.99999974E-6 : f32
    %31 = vector.broadcast %cst_35 : f32 to vector<1x128xf32>
    %32 = arith.addf %29, %31 : vector<1x128xf32>
    %33 = math.rsqrt %32 : vector<1x128xf32>
    %34 = arith.mulf %30, %33 : vector<1x128xf32>
    %c0_36 = arith.constant 0 : index
    %c0_37 = arith.constant 0 : index
    %35 = vector.load %arg3[%c0_36, %c0_37] : memref<1x128xf32, #tpu.memory_space<vmem>>, vector<1x128xf32>
    %36 = arith.mulf %20, %34 : vector<1x128xf32>
    %37 = arith.subf %35, %36 : vector<1x128xf32>
    %38 = vector.broadcast %34 : vector<1x128xf32> to vector<32x128xf32>
    %39 = arith.mulf %16, %38 : vector<32x128xf32>
    %40 = vector.broadcast %37 : vector<1x128xf32> to vector<32x128xf32>
    %41 = arith.addf %39, %40 : vector<32x128xf32>
    %cst_38 = arith.constant 0.000000e+00 : f32
    %42 = vector.broadcast %cst_38 : f32 to vector<32x128xf32>
    %43 = arith.maximumf %41, %42 : vector<32x128xf32>
    %44 = arith.truncf %43 : vector<32x128xf32> to vector<32x128xbf16>
    %45 = vector.shape_cast %44 : vector<32x128xbf16> to vector<2x16x128xbf16>
    %c0_39 = arith.constant 0 : index
    %c16_40 = arith.constant 16 : index
    %c0_41 = arith.constant 0 : index
    %46 = vector.load %arg14[%c0_39, %c16_40, %c0_41] : memref<2x48x128xbf16, #tpu.memory_space<vmem>>, vector<2x16x128xbf16>
    tpu.vector_store %arg14[%c0_39, %c16_40, %c0_41], %45 {strides = array<i32>} : memref<2x48x128xbf16, #tpu.memory_space<vmem>>, vector<2x16x128xbf16>,
    %c0_42 = arith.constant 0 : index
    %c14_43 = arith.constant 14 : index
    %c0_44 = arith.constant 0 : index
    %47 = vector.load %arg14[%c0_42, %c14_43, %c0_44] : memref<2x48x128xbf16, #tpu.memory_space<vmem>>, vector<2x16x128xbf16>
    %c0_45 = arith.constant 0 : index
    %c15_46 = arith.constant 15 : index
    %c0_47 = arith.constant 0 : index
    %48 = vector.load %arg14[%c0_45, %c15_46, %c0_47] : memref<2x48x128xbf16, #tpu.memory_space<vmem>>, vector<2x16x128xbf16>
    %c0_48 = arith.constant 0 : index
    %c16_49 = arith.constant 16 : index
    %c0_50 = arith.constant 0 : index
    %49 = vector.load %arg14[%c0_48, %c16_49, %c0_50] : memref<2x48x128xbf16, #tpu.memory_space<vmem>>, vector<2x16x128xbf16>
    %c0_51 = arith.constant 0 : index
    %c17_52 = arith.constant 17 : index
    %c0_53 = arith.constant 0 : index
    %50 = vector.load %arg14[%c0_51, %c17_52, %c0_53] : memref<2x48x128xbf16, #tpu.memory_space<vmem>>, vector<2x16x128xbf16>
    %c0_54 = arith.constant 0 : index
    %c18_55 = arith.constant 18 : index
    %c0_56 = arith.constant 0 : index
    %51 = vector.load %arg14[%c0_54, %c18_55, %c0_56] : memref<2x48x128xbf16, #tpu.memory_space<vmem>>, vector<2x16x128xbf16>
    %52 = tpu.concatenate %47, %48, %49, %50, %51 in 2 : vector<2x16x128xbf16>, vector<2x16x128xbf16>, vector<2x16x128xbf16>, vector<2x16x128xbf16>, vector<2x16x128xbf16> -> vector<2x16x640xbf16>
    %53 = vector.shape_cast %52 : vector<2x16x640xbf16> to vector<32x640xbf16>
    %c0_57 = arith.constant 0 : index
    %c0_58 = arith.constant 0 : index
    %54 = vector.load %arg4[%c0_57, %c0_58] : memref<640x128xbf16, #tpu.memory_space<vmem>>, vector<640x128xbf16>
    %cst_59 = arith.constant dense<0.000000e+00> : vector<32x128xf32>
    %55 = tpu.matmul %53, %54, %cst_59 {dimension_numbers = #tpu.dot_dimension_numbers<[1], [0], [0], [1], [0, 0, 1, 1], [], []>} : vector<32x640xbf16>, vector<640x128xbf16>, vector<32x128xf32> -> vector<32x128xf32>
    %cst_60 = arith.constant dense<0.000000e+00> : vector<128xf32>
    %56 = vector.multi_reduction <add>, %55, %cst_60 [0] : vector<32x128xf32> to vector<128xf32>
    %57 = vector.shape_cast %56 : vector<128xf32> to vector<1x128xf32>
    %cst_61 = arith.constant 3.125000e-02 : f32
    %58 = vector.broadcast %cst_61 : f32 to vector<1x128xf32>
    %59 = arith.mulf %57, %58 : vector<1x128xf32>
    %60 = arith.mulf %55, %55 : vector<32x128xf32>
    %cst_62 = arith.constant dense<0.000000e+00> : vector<128xf32>
    %61 = vector.multi_reduction <add>, %60, %cst_62 [0] : vector<32x128xf32> to vector<128xf32>
    %62 = vector.shape_cast %61 : vector<128xf32> to vector<1x128xf32>
    %cst_63 = arith.constant 3.125000e-02 : f32
    %63 = vector.broadcast %cst_63 : f32 to vector<1x128xf32>
    %64 = arith.mulf %62, %63 : vector<1x128xf32>
    %65 = arith.mulf %59, %59 : vector<1x128xf32>
    %66 = arith.subf %64, %65 : vector<1x128xf32>
    %cst_64 = arith.constant 0.000000e+00 : f32
    %67 = vector.broadcast %cst_64 : f32 to vector<1x128xf32>
    %68 = arith.maximumf %66, %67 : vector<1x128xf32>
    %c0_65 = arith.constant 0 : index
    %c0_66 = arith.constant 0 : index
    %69 = vector.load %arg5[%c0_65, %c0_66] : memref<1x128xf32, #tpu.memory_space<vmem>>, vector<1x128xf32>
    %cst_67 = arith.constant 9.99999974E-6 : f32
    %70 = vector.broadcast %cst_67 : f32 to vector<1x128xf32>
    %71 = arith.addf %68, %70 : vector<1x128xf32>
    %72 = math.rsqrt %71 : vector<1x128xf32>
    %73 = arith.mulf %69, %72 : vector<1x128xf32>
    %c0_68 = arith.constant 0 : index
    %c0_69 = arith.constant 0 : index
    %74 = vector.load %arg6[%c0_68, %c0_69] : memref<1x128xf32, #tpu.memory_space<vmem>>, vector<1x128xf32>
    %75 = arith.mulf %59, %73 : vector<1x128xf32>
    %76 = arith.subf %74, %75 : vector<1x128xf32>
    %77 = vector.broadcast %73 : vector<1x128xf32> to vector<32x128xf32>
    %78 = arith.mulf %55, %77 : vector<32x128xf32>
    %79 = vector.broadcast %76 : vector<1x128xf32> to vector<32x128xf32>
    %80 = arith.addf %78, %79 : vector<32x128xf32>
    %cst_70 = arith.constant 0.000000e+00 : f32
    %81 = vector.broadcast %cst_70 : f32 to vector<32x128xf32>
    %82 = arith.maximumf %80, %81 : vector<32x128xf32>
    %83 = arith.truncf %82 : vector<32x128xf32> to vector<32x128xbf16>
    %84 = vector.shape_cast %83 : vector<32x128xbf16> to vector<2x16x128xbf16>
    %c0_71 = arith.constant 0 : index
    %c16_72 = arith.constant 16 : index
    %c0_73 = arith.constant 0 : index
    %85 = vector.load %arg14[%c0_71, %c16_72, %c0_73] : memref<2x48x128xbf16, #tpu.memory_space<vmem>>, vector<2x16x128xbf16>
    tpu.vector_store %arg14[%c0_71, %c16_72, %c0_73], %84 {strides = array<i32>} : memref<2x48x128xbf16, #tpu.memory_space<vmem>>, vector<2x16x128xbf16>,
    %c0_74 = arith.constant 0 : index
    %c15_75 = arith.constant 15 : index
    %c0_76 = arith.constant 0 : index
    %86 = vector.load %arg14[%c0_74, %c15_75, %c0_76] : memref<2x48x128xbf16, #tpu.memory_space<vmem>>, vector<2x16x128xbf16>
    %c0_77 = arith.constant 0 : index
    %c16_78 = arith.constant 16 : index
    %c0_79 = arith.constant 0 : index
    %87 = vector.load %arg14[%c0_77, %c16_78, %c0_79] : memref<2x48x128xbf16, #tpu.memory_space<vmem>>, vector<2x16x128xbf16>
    %c0_80 = arith.constant 0 : index
    %c17_81 = arith.constant 17 : index
    %c0_82 = arith.constant 0 : index
    %88 = vector.load %arg14[%c0_80, %c17_81, %c0_82] : memref<2x48x128xbf16, #tpu.memory_space<vmem>>, vector<2x16x128xbf16>
    %89 = tpu.concatenate %86, %87, %88 in 2 : vector<2x16x128xbf16>, vector<2x16x128xbf16>, vector<2x16x128xbf16> -> vector<2x16x384xbf16>
    %90 = vector.shape_cast %89 : vector<2x16x384xbf16> to vector<32x384xbf16>
    %c0_83 = arith.constant 0 : index
    %c0_84 = arith.constant 0 : index
    %91 = vector.load %arg7[%c0_83, %c0_84] : memref<384x128xbf16, #tpu.memory_space<vmem>>, vector<384x128xbf16>
    %cst_85 = arith.constant dense<0.000000e+00> : vector<32x128xf32>
    %92 = tpu.matmul %90, %91, %cst_85 {dimension_numbers = #tpu.dot_dimension_numbers<[1], [0], [0], [1], [0, 0, 1, 1], [], []>} : vector<32x384xbf16>, vector<384x128xbf16>, vector<32x128xf32> -> vector<32x128xf32>
    %cst_86 = arith.constant dense<0.000000e+00> : vector<128xf32>
    %93 = vector.multi_reduction <add>, %92, %cst_86 [0] : vector<32x128xf32> to vector<128xf32>
    %94 = vector.shape_cast %93 : vector<128xf32> to vector<1x128xf32>
    %cst_87 = arith.constant 3.125000e-02 : f32
    %95 = vector.broadcast %cst_87 : f32 to vector<1x128xf32>
    %96 = arith.mulf %94, %95 : vector<1x128xf32>
    %97 = arith.mulf %92, %92 : vector<32x128xf32>
    %cst_88 = arith.constant dense<0.000000e+00> : vector<128xf32>
    %98 = vector.multi_reduction <add>, %97, %cst_88 [0] : vector<32x128xf32> to vector<128xf32>
    %99 = vector.shape_cast %98 : vector<128xf32> to vector<1x128xf32>
    %cst_89 = arith.constant 3.125000e-02 : f32
    %100 = vector.broadcast %cst_89 : f32 to vector<1x128xf32>
    %101 = arith.mulf %99, %100 : vector<1x128xf32>
    %102 = arith.mulf %96, %96 : vector<1x128xf32>
    %103 = arith.subf %101, %102 : vector<1x128xf32>
    %cst_90 = arith.constant 0.000000e+00 : f32
    %104 = vector.broadcast %cst_90 : f32 to vector<1x128xf32>
    %105 = arith.maximumf %103, %104 : vector<1x128xf32>
    %c0_91 = arith.constant 0 : index
    %c0_92 = arith.constant 0 : index
    %106 = vector.load %arg8[%c0_91, %c0_92] : memref<1x128xf32, #tpu.memory_space<vmem>>, vector<1x128xf32>
    %cst_93 = arith.constant 9.99999974E-6 : f32
    %107 = vector.broadcast %cst_93 : f32 to vector<1x128xf32>
    %108 = arith.addf %105, %107 : vector<1x128xf32>
    %109 = math.rsqrt %108 : vector<1x128xf32>
    %110 = arith.mulf %106, %109 : vector<1x128xf32>
    %c0_94 = arith.constant 0 : index
    %c0_95 = arith.constant 0 : index
    %111 = vector.load %arg9[%c0_94, %c0_95] : memref<1x128xf32, #tpu.memory_space<vmem>>, vector<1x128xf32>
    %112 = arith.mulf %96, %110 : vector<1x128xf32>
    %113 = arith.subf %111, %112 : vector<1x128xf32>
    %114 = vector.broadcast %110 : vector<1x128xf32> to vector<32x128xf32>
    %115 = arith.mulf %92, %114 : vector<32x128xf32>
    %116 = vector.broadcast %113 : vector<1x128xf32> to vector<32x128xf32>
    %117 = arith.addf %115, %116 : vector<32x128xf32>
    %118 = vector.shape_cast %4 : vector<2x16x128xbf16> to vector<32x128xbf16>
    %c0_96 = arith.constant 0 : index
    %c0_97 = arith.constant 0 : index
    %119 = vector.load %arg10[%c0_96, %c0_97] : memref<128x128xbf16, #tpu.memory_space<vmem>>, vector<128x128xbf16>
    %cst_98 = arith.constant dense<0.000000e+00> : vector<32x128xf32>
    %120 = tpu.matmul %118, %119, %cst_98 {dimension_numbers = #tpu.dot_dimension_numbers<[1], [0], [0], [1], [0, 0, 1, 1], [], []>} : vector<32x128xbf16>, vector<128x128xbf16>, vector<32x128xf32> -> vector<32x128xf32>
    %cst_99 = arith.constant dense<0.000000e+00> : vector<128xf32>
    %121 = vector.multi_reduction <add>, %120, %cst_99 [0] : vector<32x128xf32> to vector<128xf32>
    %122 = vector.shape_cast %121 : vector<128xf32> to vector<1x128xf32>
    %cst_100 = arith.constant 3.125000e-02 : f32
    %123 = vector.broadcast %cst_100 : f32 to vector<1x128xf32>
    %124 = arith.mulf %122, %123 : vector<1x128xf32>
    %125 = arith.mulf %120, %120 : vector<32x128xf32>
    %cst_101 = arith.constant dense<0.000000e+00> : vector<128xf32>
    %126 = vector.multi_reduction <add>, %125, %cst_101 [0] : vector<32x128xf32> to vector<128xf32>
    %127 = vector.shape_cast %126 : vector<128xf32> to vector<1x128xf32>
    %cst_102 = arith.constant 3.125000e-02 : f32
    %128 = vector.broadcast %cst_102 : f32 to vector<1x128xf32>
    %129 = arith.mulf %127, %128 : vector<1x128xf32>
    %130 = arith.mulf %124, %124 : vector<1x128xf32>
    %131 = arith.subf %129, %130 : vector<1x128xf32>
    %cst_103 = arith.constant 0.000000e+00 : f32
    %132 = vector.broadcast %cst_103 : f32 to vector<1x128xf32>
    %133 = arith.maximumf %131, %132 : vector<1x128xf32>
    %c0_104 = arith.constant 0 : index
    %c0_105 = arith.constant 0 : index
    %134 = vector.load %arg11[%c0_104, %c0_105] : memref<1x128xf32, #tpu.memory_space<vmem>>, vector<1x128xf32>
    %cst_106 = arith.constant 9.99999974E-6 : f32
    %135 = vector.broadcast %cst_106 : f32 to vector<1x128xf32>
    %136 = arith.addf %133, %135 : vector<1x128xf32>
    %137 = math.rsqrt %136 : vector<1x128xf32>
    %138 = arith.mulf %134, %137 : vector<1x128xf32>
    %c0_107 = arith.constant 0 : index
    %c0_108 = arith.constant 0 : index
    %139 = vector.load %arg12[%c0_107, %c0_108] : memref<1x128xf32, #tpu.memory_space<vmem>>, vector<1x128xf32>
    %140 = arith.mulf %124, %138 : vector<1x128xf32>
    %141 = arith.subf %139, %140 : vector<1x128xf32>
    %142 = vector.broadcast %138 : vector<1x128xf32> to vector<32x128xf32>
    %143 = arith.mulf %120, %142 : vector<32x128xf32>
    %144 = vector.broadcast %141 : vector<1x128xf32> to vector<32x128xf32>
    %145 = arith.addf %143, %144 : vector<32x128xf32>
    %146 = arith.addf %117, %145 : vector<32x128xf32>
    %cst_109 = arith.constant 0.000000e+00 : f32
    %147 = vector.broadcast %cst_109 : f32 to vector<32x128xf32>
    %148 = arith.maximumf %146, %147 : vector<32x128xf32>
    %149 = vector.shape_cast %148 : vector<32x128xf32> to vector<2x16x128xf32>
    %c0_110 = arith.constant 0 : index
    %c0_111 = arith.constant 0 : index
    %c0_112 = arith.constant 0 : index
    %150 = vector.load %arg13[%c0_110, %c0_111, %c0_112] : memref<2x16x128xf32, #tpu.memory_space<vmem>>, vector<2x16x128xf32>
    tpu.vector_store %arg13[%c0_110, %c0_111, %c0_112], %149 {strides = array<i32>} : memref<2x16x128xf32, #tpu.memory_space<vmem>>, vector<2x16x128xf32>,
    return
  }
}

</mosaic_0001>

<llo_original>
// kernel: tpu_custom_call.1
$region0: #{tpu_custom_call.1}
  #allocation0 [shape = 'u32[]', space=smem, size = 0x4, offset = 0x4, fixed_abs, tag = 'smem constant byte address 0x4 - core index']
  #allocation1 [shape = 'u32[72,128]{1,0:T(1,128)}', space=vmem, size = 0x9000, scoped, tag = 'internal scratch']
  #allocation2 [shape = 'bf16[2,48,128]{2,1,0:T(8,128)(2,1)}', space=vmem, size = 0x6000, scoped, tag = 'scratch operand']
  %s0 = inlined_call_operand.hbm [shape: bf16[2,16,128], index: 0, kind: input, shape index: {}]
  %s1 = inlined_call_operand.hbm [shape: bf16[896,128], index: 1, kind: input, shape index: {}]
  %s2 = inlined_call_operand.vmem [shape: f32[1,128], index: 2, kind: input, shape index: {}]
  %s3 = inlined_call_operand.vmem [shape: f32[1,128], index: 3, kind: input, shape index: {}]
  %s4 = inlined_call_operand.hbm [shape: bf16[640,128], index: 4, kind: input, shape index: {}]
  %s5 = inlined_call_operand.vmem [shape: f32[1,128], index: 5, kind: input, shape index: {}]
  %s6 = inlined_call_operand.vmem [shape: f32[1,128], index: 6, kind: input, shape index: {}]
  %s7 = inlined_call_operand.hbm [shape: bf16[384,128], index: 7, kind: input, shape index: {}]
  %s8 = inlined_call_operand.vmem [shape: f32[1,128], index: 8, kind: input, shape index: {}]
  %s9 = inlined_call_operand.vmem [shape: f32[1,128], index: 9, kind: input, shape index: {}]
  %s10 = inlined_call_operand.hbm [shape: bf16[128,128], index: 10, kind: input, shape index: {}]
  %s11 = inlined_call_operand.vmem [shape: f32[1,128], index: 11, kind: input, shape index: {}]
  %s12 = inlined_call_operand.vmem [shape: f32[1,128], index: 12, kind: input, shape index: {}]
  %s13 = inlined_call_operand.hbm [shape: f32[2,16,128], index: 13, kind: output, shape index: {}]
  %s14 = sld [smem:[#allocation0]]
  $region82: #{tpu_custom_call.1} parent=0
    _
  %s16 = ssub.s32 1, %s14
  %s17 = scalar_select 0, %s16, %s14
  $region1: #{tpu_custom_call.1} parent=0
    #allocation3 [shape = 'u8[8192]{0}', space=vmem, size = 0x2000, scoped, tag = 'input window, operand 0, single buffered']
    #allocation4 [shape = 's32[1]{0}', space=sflag, size = 0x4, scoped, tag = 'scoped memory for tpu_custom_call.1']
    #allocation5 [shape = 's32[1]{0}', space=sflag, size = 0x4, scoped, tag = 'scoped memory for tpu_custom_call.1']
    #allocation6 [shape = 'u8[229376]{0}', space=vmem, size = 0x38000, scoped, tag = 'input window, operand 1, single buffered']
    #allocation7 [shape = 's32[1]{0}', space=sflag, size = 0x4, scoped, tag = 'scoped memory for tpu_custom_call.1']
    #allocation8 [shape = 'u8[163840]{0}', space=vmem, size = 0x28000, scoped, tag = 'input window, operand 4, single buffered']
    #allocation9 [shape = 'u8[98304]{0}', space=vmem, size = 0x18000, scoped, tag = 'input window, operand 7, single buffered']
    #allocation10 [shape = 's32[1]{0}', space=sflag, size = 0x4, scoped, tag = 'scoped memory for tpu_custom_call.1']
    #allocation11 [shape = 'u8[32768]{0}', space=vmem, size = 0x8000, scoped, tag = 'input window, operand 10, single buffered']
    #allocation12 [shape = 'u8[16384]{0}', space=vmem, size = 0x4000, scoped, tag = 'output window, operand 0, single buffered']
    %18 = vsyncpa [#allocation4], 0
    %19 = vsyncpa [#allocation7], 0
    %20 = vsyncpa [#allocation10], 0
    %21 = vsyncpa [#allocation5], 0
    // Predicated region
    $region2: #{tpu_custom_call.1} parent=1 // pred_check
      _
    $region3: #{tpu_custom_call.1} parent=1 // pred_check_branch
      %23 = sbr.rel (0) target = $region5
    $region4: #{tpu_custom_call.1} parent=1 // pred_region
      %25 = vsyncadd [#allocation4], 0
      %s26 = sshll.u32 %s0, 4
      %s27 = int_to_ptr.hbm [resolvable:$true] %s26
      %s28 = sshll.u32 [#allocation3], 4
      %s29 = int_to_ptr.vmem [resolvable:$true] %s28
      %34 = dma.hbm_to_vmem [thread:$0]  %s27, 256, %s29, [#allocation4], 64, 64, 4
    $region5: #{tpu_custom_call.1} parent=1 // pred_fallthru
      _
    // Predicated region
    $region6: #{tpu_custom_call.1} parent=1 // pred_check
      _
    $region7: #{tpu_custom_call.1} parent=1 // pred_check_branch
      %36 = sbr.rel (0) target = $region9
    $region8: #{tpu_custom_call.1} parent=1 // pred_region
      %38 = vsyncadd [#allocation7], 0
      %s39 = sshll.u32 %s1, 4
      %s40 = int_to_ptr.hbm [resolvable:$true] %s39
      %s41 = sshll.u32 [#allocation6], 4
      %s42 = int_to_ptr.vmem [resolvable:$true] %s41
      %47 = dma.hbm_to_vmem [thread:$0]  %s40, 7168, %s42, [#allocation7], 64, 64, 4
    $region9: #{tpu_custom_call.1} parent=1 // pred_fallthru
      _
    // Predicated region
    $region10: #{tpu_custom_call.1} parent=1 // pred_check
      _
    $region11: #{tpu_custom_call.1} parent=1 // pred_check_branch
      %49 = sbr.rel (0) target = $region13
    $region12: #{tpu_custom_call.1} parent=1 // pred_region
      _
    $region13: #{tpu_custom_call.1} parent=1 // pred_fallthru
      _
    // Predicated region
    $region14: #{tpu_custom_call.1} parent=1 // pred_check
      _
    $region15: #{tpu_custom_call.1} parent=1 // pred_check_branch
      %51 = sbr.rel (0) target = $region17
    $region16: #{tpu_custom_call.1} parent=1 // pred_region
      _
    $region17: #{tpu_custom_call.1} parent=1 // pred_fallthru
      _
    // Predicated region
    $region18: #{tpu_custom_call.1} parent=1 // pred_check
      _
    $region19: #{tpu_custom_call.1} parent=1 // pred_check_branch
      %53 = sbr.rel (0) target = $region21
    $region20: #{tpu_custom_call.1} parent=1 // pred_region
      %55 = vsyncadd [#allocation7], 0
      %s56 = sshll.u32 %s4, 4
      %s57 = int_to_ptr.hbm [resolvable:$true] %s56
      %s58 = sshll.u32 [#allocation8], 4
      %s59 = int_to_ptr.vmem [resolvable:$true] %s58
      %64 = dma.hbm_to_vmem [thread:$0]  %s57, 5120, %s59, [#allocation7], 64, 64, 4
    $region21: #{tpu_custom_call.1} parent=1 // pred_fallthru
      _
    // Predicated region
    $region22: #{tpu_custom_call.1} parent=1 // pred_check
      _
    $region23: #{tpu_custom_call.1} parent=1 // pred_check_branch
      %66 = sbr.rel (0) target = $region25
    $region24: #{tpu_custom_call.1} parent=1 // pred_region
      _
    $region25: #{tpu_custom_call.1} parent=1 // pred_fallthru
      _
    // Predicated region
    $region26: #{tpu_custom_call.1} parent=1 // pred_check
      _
    $region27: #{tpu_custom_call.1} parent=1 // pred_check_branch
      %68 = sbr.rel (0) target = $region29
    $region28: #{tpu_custom_call.1} parent=1 // pred_region
      _
    $region29: #{tpu_custom_call.1} parent=1 // pred_fallthru
      _
    // Predicated region
    $region30: #{tpu_custom_call.1} parent=1 // pred_check
      _
    $region31: #{tpu_custom_call.1} parent=1 // pred_check_branch
      %70 = sbr.rel (0) target = $region33
    $region32: #{tpu_custom_call.1} parent=1 // pred_region
      %72 = vsyncadd [#allocation10], 0
      %s73 = sshll.u32 %s7, 4
      %s74 = int_to_ptr.hbm [resolvable:$true] %s73
      %s75 = sshll.u32 [#allocation9], 4
      %s76 = int_to_ptr.vmem [resolvable:$true] %s75
      %81 = dma.hbm_to_vmem [thread:$0]  %s74, 3072, %s76, [#allocation10], 64, 64, 4
    $region33: #{tpu_custom_call.1} parent=1 // pred_fallthru
      _
    // Predicated region
    $region34: #{tpu_custom_call.1} parent=1 // pred_check
      _
    $region35: #{tpu_custom_call.1} parent=1 // pred_check_branch
      %83 = sbr.rel (0) target = $region37
    $region36: #{tpu_custom_call.1} parent=1 // pred_region
      _
    $region37: #{tpu_custom_call.1} parent=1 // pred_fallthru
      _
    // Predicated region
    $region38: #{tpu_custom_call.1} parent=1 // pred_check
      _
    $region39: #{tpu_custom_call.1} parent=1 // pred_check_branch
      %85 = sbr.rel (0) target = $region41
    $region40: #{tpu_custom_call.1} parent=1 // pred_region
      _
    $region41: #{tpu_custom_call.1} parent=1 // pred_fallthru
      _
    // Predicated region
    $region42: #{tpu_custom_call.1} parent=1 // pred_check
      _
    $region43: #{tpu_custom_call.1} parent=1 // pred_check_branch
      %87 = sbr.rel (0) target = $region45
    $region44: #{tpu_custom_call.1} parent=1 // pred_region
      %89 = vsyncadd [#allocation10], 0
      %s90 = sshll.u32 %s10, 4
      %s91 = int_to_ptr.hbm [resolvable:$true] %s90
      %s92 = sshll.u32 [#allocation11], 4
      %s93 = int_to_ptr.vmem [resolvable:$true] %s92
      %98 = dma.hbm_to_vmem [thread:$0]  %s91, 1024, %s93, [#allocation10], 64, 64, 4
    $region45: #{tpu_custom_call.1} parent=1 // pred_fallthru
      _
    // Predicated region
    $region46: #{tpu_custom_call.1} parent=1 // pred_check
      _
    $region47: #{tpu_custom_call.1} parent=1 // pred_check_branch
      %100 = sbr.rel (0) target = $region49
    $region48: #{tpu_custom_call.1} parent=1 // pred_region
      _
    $region49: #{tpu_custom_call.1} parent=1 // pred_fallthru
      _
    // Predicated region
    $region50: #{tpu_custom_call.1} parent=1 // pred_check
      _
    $region51: #{tpu_custom_call.1} parent=1 // pred_check_branch
      %102 = sbr.rel (0) target = $region53
    $region52: #{tpu_custom_call.1} parent=1 // pred_region
      _
    $region53: #{tpu_custom_call.1} parent=1 // pred_fallthru
      _
    // Predicated region
    $region54: #{tpu_custom_call.1} parent=1 // pred_check
      _
    $region55: #{tpu_custom_call.1} parent=1 // pred_check_branch
      %104 = sbr.rel (0) target = $region57
    $region56: #{tpu_custom_call.1} parent=1 // pred_region
      %106 = dma.done [#allocation4], 256
    $region57: #{tpu_custom_call.1} parent=1 // pred_fallthru
      _
    // Predicated region
    $region58: #{tpu_custom_call.1} parent=1 // pred_check
      _
    $region59: #{tpu_custom_call.1} parent=1 // pred_check_branch
      %108 = sbr.rel (0) target = $region61
    $region60: #{tpu_custom_call.1} parent=1 // pred_region
      %110 = dma.done [#allocation7], 7168
    $region61: #{tpu_custom_call.1} parent=1 // pred_fallthru
      _
    // Predicated region
    $region62: #{tpu_custom_call.1} parent=1 // pred_check
      _
    $region63: #{tpu_custom_call.1} parent=1 // pred_check_branch
      %112 = sbr.rel (0) target = $region65
    $region64: #{tpu_custom_call.1} parent=1 // pred_region
      %114 = dma.done [#allocation7], 5120
    $region65: #{tpu_custom_call.1} parent=1 // pred_fallthru
      _
    // Predicated region
    $region66: #{tpu_custom_call.1} parent=1 // pred_check
      _
    $region67: #{tpu_custom_call.1} parent=1 // pred_check_branch
      %116 = sbr.rel (0) target = $region69
    $region68: #{tpu_custom_call.1} parent=1 // pred_region
      %118 = dma.done [#allocation10], 3072
    $region69: #{tpu_custom_call.1} parent=1 // pred_fallthru
      _
    // Predicated region
    $region70: #{tpu_custom_call.1} parent=1 // pred_check
      _
    $region71: #{tpu_custom_call.1} parent=1 // pred_check_branch
      %120 = sbr.rel (0) target = $region73
    $region72: #{tpu_custom_call.1} parent=1 // pred_region
      %122 = dma.done [#allocation10], 1024
    $region73: #{tpu_custom_call.1} parent=1 // pred_fallthru
      _
    %124 = vst [vmem:[#allocation2] sm:$0xf] 0
    %125 = vst [vmem:[#allocation2 + $0x4] sm:$0xf] 0
    %126 = vst [vmem:[#allocation2 + $0x18] sm:$0xf] 0
    %127 = vst [vmem:[#allocation2 + $0x1c] sm:$0xf] 0
    %128 = vst [vmem:[#allocation2 + $0x10] sm:$0xf] 0
    %129 = vst [vmem:[#allocation2 + $0x14] sm:$0xf] 0
    %130 = vst [vmem:[#allocation2 + $0x28] sm:$0xf] 0
    %131 = vst [vmem:[#allocation2 + $0x2c] sm:$0xf] 0
    %v132 = vld [vmem:[#allocation3] sm:$0xf]
    %v133 = vld [vmem:[#allocation3 + $0x4] sm:$0xf]
    %v134 = vld [vmem:[#allocation3 + $0x8] sm:$0xf]
    %v135 = vld [vmem:[#allocation3 + $0xc] sm:$0xf]
    %136 = vst [vmem:[#allocation2 + $0x8] sm:$0xf] %v132
    %137 = vst [vmem:[#allocation2 + $0xc] sm:$0xf] %v133
    %138 = vst [vmem:[#allocation2 + $0x20] sm:$0xf] %v134
    %139 = vst [vmem:[#allocation2 + $0x24] sm:$0xf] %v135
    %v140 = vld [vmem:[#allocation2 + $0x4] sm:$0xc]
    %v141 = vld [vmem:[#allocation2 + $0x8] sm:$0xf]
    %v142 = vld [vmem:[#allocation2 + $0xc] sm:$0x7]
    %v143 = vld [vmem:[#allocation2 + $0x1c] sm:$0xc]
    %v144 = vld [vmem:[#allocation2 + $0x20] sm:$0xf]
    %v145 = vld [vmem:[#allocation2 + $0x24] sm:$0x7]
    %v146 = vld [vmem:[#allocation2 + $0x4] sm:$0x8]
    %v147 = vld [vmem:[#allocation2 + $0x1c] sm:$0x8]
    %v148 = vld [vmem:[#allocation2 + $0xc] sm:$0xf]
    %v149 = vld [vmem:[#allocation2 + $0x24] sm:$0xf]
    %v150 = vld [vmem:[#allocation2 + $0x10] sm:$0x1]
    %v151 = vld [vmem:[#allocation2 + $0x28] sm:$0x1]
    %v152 = vld [vmem:[#allocation2 + $0x8] sm:$0xe]
    %v153 = vld [vmem:[#allocation2 + $0x20] sm:$0xe]
    %v154 = vld [vmem:[#allocation2 + $0x10] sm:$0x3]
    %v155 = vld [vmem:[#allocation2 + $0x28] sm:$0x3]
    %v162 = vunpack.c.l.b16 %v140
    %v163 = vunpack.c.l.b16 %v141
    %v164 = vunpack.c.l.b16 %v142
    %v165 = vunpack.c.l.b16 %v143
    %v166 = vunpack.c.l.b16 %v144
    %v167 = vunpack.c.l.b16 %v145
    %v168 = vpack.c.b16 %v163, %v162
    %v169 = vpack.c.b16 %v164, %v164
    %v170 = vpack.c.b16 %v166, %v165
    %v171 = vpack.c.b16 %v167, %v167
    %v174 = vunpack.c.l.b16 %v146
    %v175 = vunpack.c.l.b16 %v147
    %v176 = vpack.c.b16 %v163, %v174
    %v177 = vpack.c.b16 %v166, %v175
    %vm178 = vsmask.f32 7424
    %v180 = vshrl.u32 %v176, 16
    %v182 = vshll.u32 %v176, 16
    %v184 = vrot.slane %v182, 1
    %v185 = vor.u32 %v180, %v184
    %v187 = vshll.u32 %v169, 16
    %v189 = vrot.slane %v187, 1
    %v190 = vsel %vm178, %v185, %v189
    %v191 = vshrl.u32 %v169, 16
    %v193 = vor.u32 %v191, %v189
    %v195 = vshrl.u32 %v177, 16
    %v197 = vshll.u32 %v177, 16
    %v199 = vrot.slane %v197, 1
    %v200 = vor.u32 %v195, %v199
    %v202 = vshll.u32 %v171, 16
    %v204 = vrot.slane %v202, 1
    %v205 = vsel %vm178, %v200, %v204
    %v206 = vshrl.u32 %v171, 16
    %v208 = vor.u32 %v206, %v204
    %v211 = vunpack.c.l.b16 %v148
    %v212 = vunpack.c.l.b16 %v149
    %v213 = vpack.c.b16 %v211, %v211
    %v214 = vpack.c.b16 %v212, %v212
    %vm215 = vcmask 1046528
    %v216 = vrot.slane %v176, 1
    %v217 = vrot.slane %v213, 1
    %v218 = vsel %vm215, %v216, %v217
    %v219 = vrot.slane %v177, 1
    %v220 = vrot.slane %v214, 1
    %v221 = vsel %vm215, %v219, %v220
    %v222 = vpack.c.b16 %v211, %v163
    %v223 = vpack.c.b16 %v212, %v166
    %v225 = vshrl.u32 %v222, 16
    %v227 = vrot.slane %v225, 5
    %v228 = vshll.u32 %v222, 16
    %v230 = vrot.slane %v228, 6
    %v231 = vor.u32 %v227, %v230
    %v233 = vshrl.u32 %v223, 16
    %v235 = vrot.slane %v233, 5
    %v236 = vshll.u32 %v223, 16
    %v238 = vrot.slane %v236, 6
    %v239 = vor.u32 %v235, %v238
    %v242 = vunpack.c.l.b16 %v150
    %v243 = vunpack.c.l.b16 %v151
    %v244 = vpack.c.b16 %v242, %v242
    %v245 = vpack.c.b16 %v243, %v243
    %vm246 = vcmask 1041408
    %v247 = vrot.slane %v222, 6
    %v248 = vrot.slane %v244, 6
    %v249 = vsel %vm246, %v247, %v248
    %v250 = vrot.slane %v223, 6
    %v251 = vrot.slane %v245, 6
    %v252 = vsel %vm246, %v250, %v251
    %v255 = vunpack.c.l.b16 %v152
    %v256 = vunpack.c.l.b16 %v153
    %v257 = vpack.c.b16 %v211, %v255
    %v258 = vpack.c.b16 %v212, %v256
    %vm259 = vsmask.f32 1280
    %v261 = vshrl.u32 %v257, 16
    %v263 = vrot.slane %v261, 6
    %v264 = vshll.u32 %v257, 16
    %v266 = vrot.slane %v264, 7
    %v267 = vor.u32 %v263, %v266
    %v269 = vshrl.u32 %v244, 16
    %v271 = vrot.slane %v269, 6
    %v272 = vshll.u32 %v244, 16
    %v274 = vrot.slane %v272, 7
    %v275 = vor.u32 %v271, %v274
    %v276 = vsel %vm259, %v267, %v275
    %v278 = vshrl.u32 %v258, 16
    %v280 = vrot.slane %v278, 6
    %v281 = vshll.u32 %v258, 16
    %v283 = vrot.slane %v281, 7
    %v284 = vor.u32 %v280, %v283
    %v286 = vshrl.u32 %v245, 16
    %v288 = vrot.slane %v286, 6
    %v289 = vshll.u32 %v245, 16
    %v291 = vrot.slane %v289, 7
    %v292 = vor.u32 %v288, %v291
    %v293 = vsel %vm259, %v284, %v292
    %v296 = vunpack.c.l.b16 %v154
    %v297 = vunpack.c.l.b16 %v155
    %v298 = vpack.c.b16 %v296, %v296
    %v299 = vpack.c.b16 %v297, %v297
    %vm300 = vcmask 1040384
    %v301 = vrot.slane %v257, 7
    %v302 = vrot.slane %v298, 7
    %v303 = vsel %vm300, %v301, %v302
    %v304 = vrot.slane %v258, 7
    %v305 = vrot.slane %v299, 7
    %v306 = vsel %vm300, %v304, %v305
    %vm307 = vsmask.f32 5376
    %v309 = vshrl.u32 %v168, 16
    %v311 = vrot.slane %v309, 2
    %v312 = vshll.u32 %v168, 16
    %v314 = vrot.slane %v312, 3
    %v315 = vor.u32 %v311, %v314
    %v316 = vrot.slane %v191, 2
    %v317 = vrot.slane %v187, 3
    %v318 = vor.u32 %v316, %v317
    %v319 = vsel %vm307, %v315, %v318
    %v321 = vshrl.u32 %v190, 16
    %v323 = vrot.slane %v321, 2
    %v324 = vshll.u32 %v190, 16
    %v326 = vrot.slane %v324, 3
    %v327 = vor.u32 %v323, %v326
    %v329 = vshrl.u32 %v193, 16
    %v331 = vrot.slane %v329, 2
    %v332 = vshll.u32 %v193, 16
    %v334 = vrot.slane %v332, 3
    %v335 = vor.u32 %v331, %v334
    %v336 = vsel %vm307, %v327, %v335
    %v338 = vshrl.u32 %v218, 16
    %v340 = vrot.slane %v338, 2
    %v341 = vshll.u32 %v218, 16
    %v343 = vrot.slane %v341, 3
    %v344 = vor.u32 %v340, %v343
    %v346 = vshrl.u32 %v217, 16
    %v348 = vrot.slane %v346, 2
    %v349 = vshll.u32 %v217, 16
    %v351 = vrot.slane %v349, 3
    %v352 = vor.u32 %v348, %v351
    %v353 = vsel %vm307, %v344, %v352
    %v355 = vshrl.u32 %v231, 16
    %v357 = vrot.slane %v355, 2
    %v358 = vshll.u32 %v231, 16
    %v360 = vrot.slane %v358, 3
    %v361 = vor.u32 %v357, %v360
    %v362 = vsel %vm307, %v361, %v361
    %v364 = vshrl.u32 %v247, 16
    %v366 = vrot.slane %v364, 2
    %v367 = vshll.u32 %v247, 16
    %v369 = vrot.slane %v367, 3
    %v370 = vor.u32 %v366, %v369
    %v372 = vshrl.u32 %v249, 16
    %v374 = vrot.slane %v372, 2
    %v375 = vshll.u32 %v249, 16
    %v377 = vrot.slane %v375, 3
    %v378 = vor.u32 %v374, %v377
    %v379 = vsel %vm307, %v370, %v378
    %v381 = vshrl.u32 %v267, 16
    %v383 = vrot.slane %v381, 2
    %v384 = vshll.u32 %v267, 16
    %v386 = vrot.slane %v384, 3
    %v387 = vor.u32 %v383, %v386
    %v389 = vshrl.u32 %v276, 16
    %v391 = vrot.slane %v389, 2
    %v392 = vshll.u32 %v276, 16
    %v394 = vrot.slane %v392, 3
    %v395 = vor.u32 %v391, %v394
    %v396 = vsel %vm307, %v387, %v395
    %v398 = vshrl.u32 %v301, 16
    %v400 = vrot.slane %v398, 2
    %v401 = vshll.u32 %v301, 16
    %v403 = vrot.slane %v401, 3
    %v404 = vor.u32 %v400, %v403
    %v406 = vshrl.u32 %v303, 16
    %v408 = vrot.slane %v406, 2
    %v409 = vshll.u32 %v303, 16
    %v411 = vrot.slane %v409, 3
    %v412 = vor.u32 %v408, %v411
    %v413 = vsel %vm307, %v404, %v412
    %v415 = vshrl.u32 %v170, 16
    %v417 = vrot.slane %v415, 2
    %v418 = vshll.u32 %v170, 16
    %v420 = vrot.slane %v418, 3
    %v421 = vor.u32 %v417, %v420
    %v422 = vrot.slane %v206, 2
    %v423 = vrot.slane %v202, 3
    %v424 = vor.u32 %v422, %v423
    %v425 = vsel %vm307, %v421, %v424
    %v427 = vshrl.u32 %v205, 16
    %v429 = vrot.slane %v427, 2
    %v430 = vshll.u32 %v205, 16
    %v432 = vrot.slane %v430, 3
    %v433 = vor.u32 %v429, %v432
    %v435 = vshrl.u32 %v208, 16
    %v437 = vrot.slane %v435, 2
    %v438 = vshll.u32 %v208, 16
    %v440 = vrot.slane %v438, 3
    %v441 = vor.u32 %v437, %v440
    %v442 = vsel %vm307, %v433, %v441
    %v444 = vshrl.u32 %v221, 16
    %v446 = vrot.slane %v444, 2
    %v447 = vshll.u32 %v221, 16
    %v449 = vrot.slane %v447, 3
    %v450 = vor.u32 %v446, %v449
    %v452 = vshrl.u32 %v220, 16
    %v454 = vrot.slane %v452, 2
    %v455 = vshll.u32 %v220, 16
    %v457 = vrot.slane %v455, 3
    %v458 = vor.u32 %v454, %v457
    %v459 = vsel %vm307, %v450, %v458
    %v461 = vshrl.u32 %v239, 16
    %v463 = vrot.slane %v461, 2
    %v464 = vshll.u32 %v239, 16
    %v466 = vrot.slane %v464, 3
    %v467 = vor.u32 %v463, %v466
    %v468 = vsel %vm307, %v467, %v467
    %v470 = vshrl.u32 %v250, 16
    %v472 = vrot.slane %v470, 2
    %v473 = vshll.u32 %v250, 16
    %v475 = vrot.slane %v473, 3
    %v476 = vor.u32 %v472, %v475
    %v478 = vshrl.u32 %v252, 16
    %v480 = vrot.slane %v478, 2
    %v481 = vshll.u32 %v252, 16
    %v483 = vrot.slane %v481, 3
    %v484 = vor.u32 %v480, %v483
    %v485 = vsel %vm307, %v476, %v484
    %v487 = vshrl.u32 %v284, 16
    %v489 = vrot.slane %v487, 2
    %v490 = vshll.u32 %v284, 16
    %v492 = vrot.slane %v490, 3
    %v493 = vor.u32 %v489, %v492
    %v495 = vshrl.u32 %v293, 16
    %v497 = vrot.slane %v495, 2
    %v498 = vshll.u32 %v293, 16
    %v500 = vrot.slane %v498, 3
    %v501 = vor.u32 %v497, %v500
    %v502 = vsel %vm307, %v493, %v501
    %v504 = vshrl.u32 %v304, 16
    %v506 = vrot.slane %v504, 2
    %v507 = vshll.u32 %v304, 16
    %v509 = vrot.slane %v507, 3
    %v510 = vor.u32 %v506, %v509
    %v512 = vshrl.u32 %v306, 16
    %v514 = vrot.slane %v512, 2
    %v515 = vshll.u32 %v306, 16
    %v517 = vrot.slane %v515, 3
    %v518 = vor.u32 %v514, %v517
    %v519 = vsel %vm307, %v510, %v518
    %v534 = vld [vmem:[#allocation6] sm:$0xf]
    %v535 = vld [vmem:[#allocation6 + $0x4] sm:$0xf]
    %v536 = vld [vmem:[#allocation6 + $0x8] sm:$0xf]
    %v537 = vld [vmem:[#allocation6 + $0xc] sm:$0xf]
    %v538 = vld [vmem:[#allocation6 + $0x10] sm:$0xf]
    %v539 = vld [vmem:[#allocation6 + $0x14] sm:$0xf]
    %v540 = vld [vmem:[#allocation6 + $0x18] sm:$0xf]
    %v541 = vld [vmem:[#allocation6 + $0x1c] sm:$0xf]
    %v542 = vld [vmem:[#allocation6 + $0x20] sm:$0xf]
    %v543 = vld [vmem:[#allocation6 + $0x24] sm:$0xf]
    %v544 = vld [vmem:[#allocation6 + $0x28] sm:$0xf]
    %v545 = vld [vmem:[#allocation6 + $0x2c] sm:$0xf]
    %v546 = vld [vmem:[#allocation6 + $0x30] sm:$0xf]
    %v547 = vld [vmem:[#allocation6 + $0x34] sm:$0xf]
    %v548 = vld [vmem:[#allocation6 + $0x38] sm:$0xf]
    %v549 = vld [vmem:[#allocation6 + $0x3c] sm:$0xf]
    %v550 = vld [vmem:[#allocation6 + $0x40] sm:$0xf]
    %v551 = vld [vmem:[#allocation6 + $0x44] sm:$0xf]
    %v552 = vld [vmem:[#allocation6 + $0x48] sm:$0xf]
    %v553 = vld [vmem:[#allocation6 + $0x4c] sm:$0xf]
    %v554 = vld [vmem:[#allocation6 + $0x50] sm:$0xf]
    %v555 = vld [vmem:[#allocation6 + $0x54] sm:$0xf]
    %v556 = vld [vmem:[#allocation6 + $0x58] sm:$0xf]
    %v557 = vld [vmem:[#allocation6 + $0x5c] sm:$0xf]
    %v558 = vld [vmem:[#allocation6 + $0x60] sm:$0xf]
    %v559 = vld [vmem:[#allocation6 + $0x64] sm:$0xf]
    %v560 = vld [vmem:[#allocation6 + $0x68] sm:$0xf]
    %v561 = vld [vmem:[#allocation6 + $0x6c] sm:$0xf]
    %v562 = vld [vmem:[#allocation6 + $0x70] sm:$0xf]
    %v563 = vld [vmem:[#allocation6 + $0x74] sm:$0xf]
    %v564 = vld [vmem:[#allocation6 + $0x78] sm:$0xf]
    %v565 = vld [vmem:[#allocation6 + $0x7c] sm:$0xf]
    %v566 = vld [vmem:[#allocation6 + $0x80] sm:$0xf]
    %v567 = vld [vmem:[#allocation6 + $0x84] sm:$0xf]
    %v568 = vld [vmem:[#allocation6 + $0x88] sm:$0xf]
    %v569 = vld [vmem:[#allocation6 + $0x8c] sm:$0xf]
    %v570 = vld [vmem:[#allocation6 + $0x90] sm:$0xf]
    %v571 = vld [vmem:[#allocation6 + $0x94] sm:$0xf]
    %v572 = vld [vmem:[#allocation6 + $0x98] sm:$0xf]
    %v573 = vld [vmem:[#allocation6 + $0x9c] sm:$0xf]
    %v574 = vld [vmem:[#allocation6 + $0xa0] sm:$0xf]
    %v575 = vld [vmem:[#allocation6 + $0xa4] sm:$0xf]
    %v576 = vld [vmem:[#allocation6 + $0xa8] sm:$0xf]
    %v577 = vld [vmem:[#allocation6 + $0xac] sm:$0xf]
    %v578 = vld [vmem:[#allocation6 + $0xb0] sm:$0xf]
    %v579 = vld [vmem:[#allocation6 + $0xb4] sm:$0xf]
    %v580 = vld [vmem:[#allocation6 + $0xb8] sm:$0xf]
    %v581 = vld [vmem:[#allocation6 + $0xbc] sm:$0xf]
    %v582 = vld [vmem:[#allocation6 + $0xc0] sm:$0xf]
    %v583 = vld [vmem:[#allocation6 + $0xc4] sm:$0xf]
    %v584 = vld [vmem:[#allocation6 + $0xc8] sm:$0xf]
    %v585 = vld [vmem:[#allocation6 + $0xcc] sm:$0xf]
    %v586 = vld [vmem:[#allocation6 + $0xd0] sm:$0xf]
    %v587 = vld [vmem:[#allocation6 + $0xd4] sm:$0xf]
    %v588 = vld [vmem:[#allocation6 + $0xd8] sm:$0xf]
    %v589 = vld [vmem:[#allocation6 + $0xdc] sm:$0xf]
    %v590 = vld [vmem:[#allocation6 + $0xe0] sm:$0xf]
    %v591 = vld [vmem:[#allocation6 + $0xe4] sm:$0xf]
    %v592 = vld [vmem:[#allocation6 + $0xe8] sm:$0xf]
    %v593 = vld [vmem:[#allocation6 + $0xec] sm:$0xf]
    %v594 = vld [vmem:[#allocation6 + $0xf0] sm:$0xf]
    %v595 = vld [vmem:[#allocation6 + $0xf4] sm:$0xf]
    %v596 = vld [vmem:[#allocation6 + $0xf8] sm:$0xf]
    %v597 = vld [vmem:[#allocation6 + $0xfc] sm:$0xf]
    %v598 = vld [vmem:[#allocation6 + $0x100] sm:$0xf]
    %v599 = vld [vmem:[#allocation6 + $0x104] sm:$0xf]
    %v600 = vld [vmem:[#allocation6 + $0x108] sm:$0xf]
    %v601 = vld [vmem:[#allocation6 + $0x10c] sm:$0xf]
    %v602 = vld [vmem:[#allocation6 + $0x110] sm:$0xf]
    %v603 = vld [vmem:[#allocation6 + $0x114] sm:$0xf]
    %v604 = vld [vmem:[#allocation6 + $0x118] sm:$0xf]
    %v605 = vld [vmem:[#allocation6 + $0x11c] sm:$0xf]
    %v606 = vld [vmem:[#allocation6 + $0x120] sm:$0xf]
    %v607 = vld [vmem:[#allocation6 + $0x124] sm:$0xf]
    %v608 = vld [vmem:[#allocation6 + $0x128] sm:$0xf]
    %v609 = vld [vmem:[#allocation6 + $0x12c] sm:$0xf]
    %v610 = vld [vmem:[#allocation6 + $0x130] sm:$0xf]
    %v611 = vld [vmem:[#allocation6 + $0x134] sm:$0xf]
    %v612 = vld [vmem:[#allocation6 + $0x138] sm:$0xf]
    %v613 = vld [vmem:[#allocation6 + $0x13c] sm:$0xf]
    %v614 = vld [vmem:[#allocation6 + $0x140] sm:$0xf]
    %v615 = vld [vmem:[#allocation6 + $0x144] sm:$0xf]
    %v616 = vld [vmem:[#allocation6 + $0x148] sm:$0xf]
    %v617 = vld [vmem:[#allocation6 + $0x14c] sm:$0xf]
    %v618 = vld [vmem:[#allocation6 + $0x150] sm:$0xf]
    %v619 = vld [vmem:[#allocation6 + $0x154] sm:$0xf]
    %v620 = vld [vmem:[#allocation6 + $0x158] sm:$0xf]
    %v621 = vld [vmem:[#allocation6 + $0x15c] sm:$0xf]
    %v622 = vld [vmem:[#allocation6 + $0x160] sm:$0xf]
    %v623 = vld [vmem:[#allocation6 + $0x164] sm:$0xf]
    %v624 = vld [vmem:[#allocation6 + $0x168] sm:$0xf]
    %v625 = vld [vmem:[#allocation6 + $0x16c] sm:$0xf]
    %v626 = vld [vmem:[#allocation6 + $0x170] sm:$0xf]
    %v627 = vld [vmem:[#allocation6 + $0x174] sm:$0xf]
    %v628 = vld [vmem:[#allocation6 + $0x178] sm:$0xf]
    %v629 = vld [vmem:[#allocation6 + $0x17c] sm:$0xf]
    %v630 = vld [vmem:[#allocation6 + $0x180] sm:$0xf]
    %v631 = vld [vmem:[#allocation6 + $0x184] sm:$0xf]
    %v632 = vld [vmem:[#allocation6 + $0x188] sm:$0xf]
    %v633 = vld [vmem:[#allocation6 + $0x18c] sm:$0xf]
    %v634 = vld [vmem:[#allocation6 + $0x190] sm:$0xf]
    %v635 = vld [vmem:[#allocation6 + $0x194] sm:$0xf]
    %v636 = vld [vmem:[#allocation6 + $0x198] sm:$0xf]
    %v637 = vld [vmem:[#allocation6 + $0x19c] sm:$0xf]
    %v638 = vld [vmem:[#allocation6 + $0x1a0] sm:$0xf]
    %v639 = vld [vmem:[#allocation6 + $0x1a4] sm:$0xf]
    %v640 = vld [vmem:[#allocation6 + $0x1a8] sm:$0xf]
    %v641 = vld [vmem:[#allocation6 + $0x1ac] sm:$0xf]
    %v642 = vld [vmem:[#allocation6 + $0x1b0] sm:$0xf]
    %v643 = vld [vmem:[#allocation6 + $0x1b4] sm:$0xf]
    %v644 = vld [vmem:[#allocation6 + $0x1b8] sm:$0xf]
    %v645 = vld [vmem:[#allocation6 + $0x1bc] sm:$0xf]
    %v758 = vunpack.c.l.b16 %v534
    %v759 = vunpack.c.l.b16 %v535
    %v760 = vunpack.c.l.b16 %v536
    %v761 = vunpack.c.l.b16 %v537
    %v762 = vunpack.c.l.b16 %v538
    %v763 = vunpack.c.l.b16 %v539
    %v764 = vunpack.c.l.b16 %v540
    %v765 = vunpack.c.l.b16 %v541
    %v766 = vunpack.c.l.b16 %v542
    %v767 = vunpack.c.l.b16 %v543
    %v768 = vunpack.c.l.b16 %v544
    %v769 = vunpack.c.l.b16 %v545
    %v770 = vunpack.c.l.b16 %v546
    %v771 = vunpack.c.l.b16 %v547
    %v772 = vunpack.c.l.b16 %v548
    %v773 = vunpack.c.l.b16 %v549
    %v774 = vunpack.c.l.b16 %v550
    %v775 = vunpack.c.l.b16 %v551
    %v776 = vunpack.c.l.b16 %v552
    %v777 = vunpack.c.l.b16 %v553
    %v778 = vunpack.c.l.b16 %v554
    %v779 = vunpack.c.l.b16 %v555
    %v780 = vunpack.c.l.b16 %v556
    %v781 = vunpack.c.l.b16 %v557
    %v782 = vunpack.c.l.b16 %v558
    %v783 = vunpack.c.l.b16 %v559
    %v784 = vunpack.c.l.b16 %v560
    %v785 = vunpack.c.l.b16 %v561
    %v786 = vunpack.c.l.b16 %v562
    %v787 = vunpack.c.l.b16 %v563
    %v788 = vunpack.c.l.b16 %v564
    %v789 = vunpack.c.l.b16 %v565
    %v790 = vunpack.c.l.b16 %v566
    %v791 = vunpack.c.l.b16 %v567
    %v792 = vunpack.c.l.b16 %v568
    %v793 = vunpack.c.l.b16 %v569
    %v794 = vunpack.c.l.b16 %v570
    %v795 = vunpack.c.l.b16 %v571
    %v796 = vunpack.c.l.b16 %v572
    %v797 = vunpack.c.l.b16 %v573
    %v798 = vunpack.c.l.b16 %v574
    %v799 = vunpack.c.l.b16 %v575
    %v800 = vunpack.c.l.b16 %v576
    %v801 = vunpack.c.l.b16 %v577
    %v802 = vunpack.c.l.b16 %v578
    %v803 = vunpack.c.l.b16 %v579
    %v804 = vunpack.c.l.b16 %v580
    %v805 = vunpack.c.l.b16 %v581
    %v806 = vunpack.c.l.b16 %v582
    %v807 = vunpack.c.l.b16 %v583
    %v808 = vunpack.c.l.b16 %v584
    %v809 = vunpack.c.l.b16 %v585
    %v810 = vunpack.c.l.b16 %v586
    %v811 = vunpack.c.l.b16 %v587
    %v812 = vunpack.c.l.b16 %v588
    %v813 = vunpack.c.l.b16 %v589
    %v814 = vunpack.c.l.b16 %v590
    %v815 = vunpack.c.l.b16 %v591
    %v816 = vunpack.c.l.b16 %v592
    %v817 = vunpack.c.l.b16 %v593
    %v818 = vunpack.c.l.b16 %v594
    %v819 = vunpack.c.l.b16 %v595
    %v820 = vunpack.c.l.b16 %v596
    %v821 = vunpack.c.l.b16 %v597
    %v822 = vunpack.c.l.b16 %v598
    %v823 = vunpack.c.l.b16 %v599
    %v824 = vunpack.c.l.b16 %v600
    %v825 = vunpack.c.l.b16 %v601
    %v826 = vunpack.c.l.b16 %v602
    %v827 = vunpack.c.l.b16 %v603
    %v828 = vunpack.c.l.b16 %v604
    %v829 = vunpack.c.l.b16 %v605
    %v830 = vunpack.c.l.b16 %v606
    %v831 = vunpack.c.l.b16 %v607
    %v832 = vunpack.c.l.b16 %v608
    %v833 = vunpack.c.l.b16 %v609
    %v834 = vunpack.c.l.b16 %v610
    %v835 = vunpack.c.l.b16 %v611
    %v836 = vunpack.c.l.b16 %v612
    %v837 = vunpack.c.l.b16 %v613
    %v838 = vunpack.c.l.b16 %v614
    %v839 = vunpack.c.l.b16 %v615
    %v840 = vunpack.c.l.b16 %v616
    %v841 = vunpack.c.l.b16 %v617
    %v842 = vunpack.c.l.b16 %v618
    %v843 = vunpack.c.l.b16 %v619
    %v844 = vunpack.c.l.b16 %v620
    %v845 = vunpack.c.l.b16 %v621
    %v846 = vunpack.c.l.b16 %v622
    %v847 = vunpack.c.l.b16 %v623
    %v848 = vunpack.c.l.b16 %v624
    %v849 = vunpack.c.l.b16 %v625
    %v850 = vunpack.c.l.b16 %v626
    %v851 = vunpack.c.l.b16 %v627
    %v852 = vunpack.c.l.b16 %v628
    %v853 = vunpack.c.l.b16 %v629
    %v854 = vunpack.c.l.b16 %v630
    %v855 = vunpack.c.l.b16 %v631
    %v856 = vunpack.c.l.b16 %v632
    %v857 = vunpack.c.l.b16 %v633
    %v858 = vunpack.c.l.b16 %v634
    %v859 = vunpack.c.l.b16 %v635
    %v860 = vunpack.c.l.b16 %v636
    %v861 = vunpack.c.l.b16 %v637
    %v862 = vunpack.c.l.b16 %v638
    %v863 = vunpack.c.l.b16 %v639
    %v864 = vunpack.c.l.b16 %v640
    %v865 = vunpack.c.l.b16 %v641
    %v866 = vunpack.c.l.b16 %v642
    %v867 = vunpack.c.l.b16 %v643
    %v868 = vunpack.c.l.b16 %v644
    %v869 = vunpack.c.l.b16 %v645
    %v870 = vpack.c.b16 %v759, %v758
    %v871 = vpack.c.b16 %v761, %v760
    %v872 = vpack.c.b16 %v763, %v762
    %v873 = vpack.c.b16 %v765, %v764
    %v874 = vpack.c.b16 %v767, %v766
    %v875 = vpack.c.b16 %v769, %v768
    %v876 = vpack.c.b16 %v771, %v770
    %v877 = vpack.c.b16 %v773, %v772
    %v878 = vpack.c.b16 %v775, %v774
    %v879 = vpack.c.b16 %v777, %v776
    %v880 = vpack.c.b16 %v779, %v778
    %v881 = vpack.c.b16 %v781, %v780
    %v882 = vpack.c.b16 %v783, %v782
    %v883 = vpack.c.b16 %v785, %v784
    %v884 = vpack.c.b16 %v787, %v786
    %v885 = vpack.c.b16 %v789, %v788
    %v886 = vpack.c.b16 %v791, %v790
    %v887 = vpack.c.b16 %v793, %v792
    %v888 = vpack.c.b16 %v795, %v794
    %v889 = vpack.c.b16 %v797, %v796
    %v890 = vpack.c.b16 %v799, %v798
    %v891 = vpack.c.b16 %v801, %v800
    %v892 = vpack.c.b16 %v803, %v802
    %v893 = vpack.c.b16 %v805, %v804
    %v894 = vpack.c.b16 %v807, %v806
    %v895 = vpack.c.b16 %v809, %v808
    %v896 = vpack.c.b16 %v811, %v810
    %v897 = vpack.c.b16 %v813, %v812
    %v898 = vpack.c.b16 %v815, %v814
    %v899 = vpack.c.b16 %v817, %v816
    %v900 = vpack.c.b16 %v819, %v818
    %v901 = vpack.c.b16 %v821, %v820
    %v902 = vpack.c.b16 %v823, %v822
    %v903 = vpack.c.b16 %v825, %v824
    %v904 = vpack.c.b16 %v827, %v826
    %v905 = vpack.c.b16 %v829, %v828
    %v906 = vpack.c.b16 %v831, %v830
    %v907 = vpack.c.b16 %v833, %v832
    %v908 = vpack.c.b16 %v835, %v834
    %v909 = vpack.c.b16 %v837, %v836
    %v910 = vpack.c.b16 %v839, %v838
    %v911 = vpack.c.b16 %v841, %v840
    %v912 = vpack.c.b16 %v843, %v842
    %v913 = vpack.c.b16 %v845, %v844
    %v914 = vpack.c.b16 %v847, %v846
    %v915 = vpack.c.b16 %v849, %v848
    %v916 = vpack.c.b16 %v851, %v850
    %v917 = vpack.c.b16 %v853, %v852
    %v918 = vpack.c.b16 %v855, %v854
    %v919 = vpack.c.b16 %v857, %v856
    %v920 = vpack.c.b16 %v859, %v858
    %v921 = vpack.c.b16 %v861, %v860
    %v922 = vpack.c.b16 %v863, %v862
    %v923 = vpack.c.b16 %v865, %v864
    %v924 = vpack.c.b16 %v867, %v866
    %v925 = vpack.c.b16 %v869, %v868
    %982 = vmatpush.bf16.msra.mxu0 %v877
    %983 = vmatpush.bf16.msra.mxu0 %v876
    %984 = vmatpush.bf16.msra.mxu0 %v875
    %985 = vmatpush.bf16.msra.mxu0 %v874
    %986 = vmatpush.bf16.msra.mxu0 %v873
    %987 = vmatpush.bf16.msra.mxu0 %v872
    %988 = vmatpush.bf16.msra.mxu0 %v871
    %989 = vmatpush.bf16.msra.mxu0 %v870
    %990 = vmatmul.bf16.gmra.mxu0 %v319
    %v991 = vpop.f32.mrf.mxu0
    %v992 = vadd.f32 0.0, %v991
    %v993 = vpop.f32.mrf.mxu0
    %v994 = vadd.f32 0.0, %v993
    %995 = vmatmul.bf16.gmra.mxu0 %v425
    %v996 = vpop.f32.mrf.mxu0
    %v997 = vadd.f32 0.0, %v996
    %v998 = vpop.f32.mrf.mxu0
    %v999 = vadd.f32 0.0, %v998
    %1000 = vdwg.mxu0
    %1001 = vmatpush.bf16.msra.mxu0 %v885
    %1002 = vmatpush.bf16.msra.mxu0 %v884
    %1003 = vmatpush.bf16.msra.mxu0 %v883
    %1004 = vmatpush.bf16.msra.mxu0 %v882
    %1005 = vmatpush.bf16.msra.mxu0 %v881
    %1006 = vmatpush.bf16.msra.mxu0 %v880
    %1007 = vmatpush.bf16.msra.mxu0 %v879
    %1008 = vmatpush.bf16.msra.mxu0 %v878
    %1009 = vmatmul.bf16.gmra.mxu0 %v336
    %v1010 = vpop.f32.mrf.mxu0
    %v1011 = vadd.f32 %v992, %v1010
    %v1012 = vpop.f32.mrf.mxu0
    %v1013 = vadd.f32 %v994, %v1012
    %1014 = vmatmul.bf16.gmra.mxu0 %v442
    %v1015 = vpop.f32.mrf.mxu0
    %v1016 = vadd.f32 %v997, %v1015
    %v1017 = vpop.f32.mrf.mxu0
    %v1018 = vadd.f32 %v999, %v1017
    %1019 = vdwg.mxu0
    %1020 = vmatpush.bf16.msra.mxu0 %v893
    %1021 = vmatpush.bf16.msra.mxu0 %v892
    %1022 = vmatpush.bf16.msra.mxu0 %v891
    %1023 = vmatpush.bf16.msra.mxu0 %v890
    %1024 = vmatpush.bf16.msra.mxu0 %v889
    %1025 = vmatpush.bf16.msra.mxu0 %v888
    %1026 = vmatpush.bf16.msra.mxu0 %v887
    %1027 = vmatpush.bf16.msra.mxu0 %v886
    %1028 = vmatmul.bf16.gmra.mxu0 %v353
    %v1029 = vpop.f32.mrf.mxu0
    %v1030 = vadd.f32 %v1011, %v1029
    %v1031 = vpop.f32.mrf.mxu0
    %v1032 = vadd.f32 %v1013, %v1031
    %1033 = vmatmul.bf16.gmra.mxu0 %v459
    %v1034 = vpop.f32.mrf.mxu0
    %v1035 = vadd.f32 %v1016, %v1034
    %v1036 = vpop.f32.mrf.mxu0
    %v1037 = vadd.f32 %v1018, %v1036
    %1038 = vdwg.mxu0
    %1039 = vmatpush.bf16.msra.mxu0 %v901
    %1040 = vmatpush.bf16.msra.mxu0 %v900
    %1041 = vmatpush.bf16.msra.mxu0 %v899
    %1042 = vmatpush.bf16.msra.mxu0 %v898
    %1043 = vmatpush.bf16.msra.mxu0 %v897
    %1044 = vmatpush.bf16.msra.mxu0 %v896
    %1045 = vmatpush.bf16.msra.mxu0 %v895
    %1046 = vmatpush.bf16.msra.mxu0 %v894
    %1047 = vmatmul.bf16.gmra.mxu0 %v362
    %v1048 = vpop.f32.mrf.mxu0
    %v1049 = vadd.f32 %v1030, %v1048
    %v1050 = vpop.f32.mrf.mxu0
    %v1051 = vadd.f32 %v1032, %v1050
    %1052 = vmatmul.bf16.gmra.mxu0 %v468
    %v1053 = vpop.f32.mrf.mxu0
    %v1054 = vadd.f32 %v1035, %v1053
    %v1055 = vpop.f32.mrf.mxu0
    %v1056 = vadd.f32 %v1037, %v1055
    %1057 = vdwg.mxu0
    %1058 = vmatpush.bf16.msra.mxu0 %v909
    %1059 = vmatpush.bf16.msra.mxu0 %v908
    %1060 = vmatpush.bf16.msra.mxu0 %v907
    %1061 = vmatpush.bf16.msra.mxu0 %v906
    %1062 = vmatpush.bf16.msra.mxu0 %v905
    %1063 = vmatpush.bf16.msra.mxu0 %v904
    %1064 = vmatpush.bf16.msra.mxu0 %v903
    %1065 = vmatpush.bf16.msra.mxu0 %v902
    %1066 = vmatmul.bf16.gmra.mxu0 %v379
    %v1067 = vpop.f32.mrf.mxu0
    %v1068 = vadd.f32 %v1049, %v1067
    %v1069 = vpop.f32.mrf.mxu0
    %v1070 = vadd.f32 %v1051, %v1069
    %1071 = vmatmul.bf16.gmra.mxu0 %v485
    %v1072 = vpop.f32.mrf.mxu0
    %v1073 = vadd.f32 %v1054, %v1072
    %v1074 = vpop.f32.mrf.mxu0
    %v1075 = vadd.f32 %v1056, %v1074
    %1076 = vdwg.mxu0
    %1077 = vmatpush.bf16.msra.mxu0 %v917
    %1078 = vmatpush.bf16.msra.mxu0 %v916
    %1079 = vmatpush.bf16.msra.mxu0 %v915
    %1080 = vmatpush.bf16.msra.mxu0 %v914
    %1081 = vmatpush.bf16.msra.mxu0 %v913
    %1082 = vmatpush.bf16.msra.mxu0 %v912
    %1083 = vmatpush.bf16.msra.mxu0 %v911
    %1084 = vmatpush.bf16.msra.mxu0 %v910
    %1085 = vmatmul.bf16.gmra.mxu0 %v396
    %v1086 = vpop.f32.mrf.mxu0
    %v1087 = vadd.f32 %v1068, %v1086
    %v1088 = vpop.f32.mrf.mxu0
    %v1089 = vadd.f32 %v1070, %v1088
    %1090 = vmatmul.bf16.gmra.mxu0 %v502
    %v1091 = vpop.f32.mrf.mxu0
    %v1092 = vadd.f32 %v1073, %v1091
    %v1093 = vpop.f32.mrf.mxu0
    %v1094 = vadd.f32 %v1075, %v1093
    %1095 = vdwg.mxu0
    %1096 = vmatpush.bf16.msra.mxu0 %v925
    %1097 = vmatpush.bf16.msra.mxu0 %v924
    %1098 = vmatpush.bf16.msra.mxu0 %v923
    %1099 = vmatpush.bf16.msra.mxu0 %v922
    %1100 = vmatpush.bf16.msra.mxu0 %v921
    %1101 = vmatpush.bf16.msra.mxu0 %v920
    %1102 = vmatpush.bf16.msra.mxu0 %v919
    %1103 = vmatpush.bf16.msra.mxu0 %v918
    %1104 = vmatmul.bf16.gmra.mxu0 %v413
    %v1105 = vpop.f32.mrf.mxu0
    %v1106 = vadd.f32 %v1087, %v1105
    %v1107 = vpop.f32.mrf.mxu0
    %v1108 = vadd.f32 %v1089, %v1107
    %1109 = vmatmul.bf16.gmra.mxu0 %v519
    %v1110 = vpop.f32.mrf.mxu0
    %v1111 = vadd.f32 %v1092, %v1110
    %v1112 = vpop.f32.mrf.mxu0
    %v1113 = vadd.f32 %v1094, %v1112
    %1114 = vdwg.mxu0
    %v1115 = vadd.f32 %v1106, %v1108
    %v1116 = vadd.f32 %v1115, %v1111
    %v1117 = vadd.f32 %v1116, %v1113
    %v1118 = vrot.slane %v1117, 4
    %v1119 = vadd.f32 %v1117, %v1118
    %v1120 = vrot.slane %v1119, 2
    %v1121 = vadd.f32 %v1119, %v1120
    %v1122 = vrot.slane %v1121, 1
    %v1123 = vadd.f32 %v1121, %v1122
    %v1124 = vmul.f32 %v1123, 0.03125
    %v1125 = vmul.f32 %v1106, %v1106
    %v1126 = vmul.f32 %v1108, %v1108
    %v1127 = vmul.f32 %v1111, %v1111
    %v1128 = vmul.f32 %v1113, %v1113
    %v1129 = vadd.f32 %v1125, %v1126
    %v1130 = vadd.f32 %v1129, %v1127
    %v1131 = vadd.f32 %v1130, %v1128
    %v1132 = vrot.slane %v1131, 4
    %v1133 = vadd.f32 %v1131, %v1132
    %v1134 = vrot.slane %v1133, 2
    %v1135 = vadd.f32 %v1133, %v1134
    %v1136 = vrot.slane %v1135, 1
    %v1137 = vadd.f32 %v1135, %v1136
    %v1138 = vmul.f32 %v1137, 0.03125
    %v1139 = vmul.f32 %v1124, %v1124
    %v1140 = vsub.f32 %v1138, %v1139
    %v1141 = vmax.f32 %v1140, 0.0
    %v1142 = vld [vmem:[%s2] sm:$0x1]
    %v1143 = vadd.f32 %v1141, 1e-05
    %v1144 = vrsqrt.pop %v1143
    %v1145 = vmul.f32 %v1144, %v1143
    %v1146 = vmul.f32 %v1145, %v1144
    %v1147 = vmul.f32 0.5, %v1146
    %v1148 = vsub.f32 1.5, %v1147
    %v1149 = vmul.f32 %v1144, %v1148
    %vm1150 = vweird.f32 %v1143
    %vm1151 = vweird.f32 %v1144
    %vm1152 = vmor %vm1150, %vm1151
    %v1153 = vsel %vm1152, %v1144, %v1149
    %v1154 = vmul.f32 %v1142, %v1153
    %v1155 = vld [vmem:[%s3] sm:$0x1]
    %v1156 = vmul.f32 %v1124, %v1154
    %v1157 = vsub.f32 %v1155, %v1156
    %v1159 = vperm.slane %v1154, 0
    %v1161 = vmul.f32 %v1106, %v1159
    %v1162 = vmul.f32 %v1108, %v1159
    %v1163 = vmul.f32 %v1111, %v1159
    %v1164 = vmul.f32 %v1113, %v1159
    %v1166 = vperm.slane %v1157, 0
    %v1168 = vadd.f32 %v1161, %v1166
    %v1169 = vadd.f32 %v1162, %v1166
    %v1170 = vadd.f32 %v1163, %v1166
    %v1171 = vadd.f32 %v1164, %v1166
    %v1172 = vmax.f32 %v1168, 0.0
    %v1173 = vmax.f32 %v1169, 0.0
    %v1174 = vmax.f32 %v1170, 0.0
    %v1175 = vmax.f32 %v1171, 0.0
    %v1176 = vpack.c.bf16 %v1172, %v1172
    %v1177 = vpack.c.bf16 %v1173, %v1173
    %v1178 = vpack.c.bf16 %v1174, %v1174
    %v1179 = vpack.c.bf16 %v1175, %v1175
    %1180 = vst [vmem:[#allocation2 + $0x8] sm:$0xf] %v1176
    %1181 = vst [vmem:[#allocation2 + $0xc] sm:$0xf] %v1177
    %1182 = vst [vmem:[#allocation2 + $0x20] sm:$0xf] %v1178
    %1183 = vst [vmem:[#allocation2 + $0x24] sm:$0xf] %v1179
    %v1184 = vld [vmem:[#allocation2 + $0x4] sm:$0x8]
    %v1185 = vld [vmem:[#allocation2 + $0x8] sm:$0xf]
    %v1186 = vld [vmem:[#allocation2 + $0xc] sm:$0x7]
    %v1187 = vld [vmem:[#allocation2 + $0x1c] sm:$0x8]
    %v1188 = vld [vmem:[#allocation2 + $0x20] sm:$0xf]
    %v1189 = vld [vmem:[#allocation2 + $0x24] sm:$0x7]
    %v1190 = vld [vmem:[#allocation2 + $0xc] sm:$0xf]
    %v1191 = vld [vmem:[#allocation2 + $0x24] sm:$0xf]
    %v1192 = vld [vmem:[#allocation2 + $0x10] sm:$0x1]
    %v1193 = vld [vmem:[#allocation2 + $0x28] sm:$0x1]
    %v1194 = vld [vmem:[#allocation2 + $0x8] sm:$0xe]
    %v1195 = vld [vmem:[#allocation2 + $0x20] sm:$0xe]
    %v1202 = vunpack.c.l.b16 %v1184
    %v1203 = vunpack.c.l.b16 %v1185
    %v1204 = vunpack.c.l.b16 %v1186
    %v1205 = vunpack.c.l.b16 %v1187
    %v1206 = vunpack.c.l.b16 %v1188
    %v1207 = vunpack.c.l.b16 %v1189
    %v1208 = vpack.c.b16 %v1203, %v1202
    %v1209 = vpack.c.b16 %v1204, %v1204
    %v1210 = vpack.c.b16 %v1206, %v1205
    %v1211 = vpack.c.b16 %v1207, %v1207
    %v1214 = vunpack.c.l.b16 %v1190
    %v1215 = vunpack.c.l.b16 %v1191
    %v1216 = vpack.c.b16 %v1214, %v1214
    %v1217 = vpack.c.b16 %v1215, %v1215
    %v1219 = vshrl.u32 %v1208, 16
    %v1221 = vshll.u32 %v1208, 16
    %v1223 = vrot.slane %v1221, 1
    %v1224 = vor.u32 %v1219, %v1223
    %v1226 = vshll.u32 %v1216, 16
    %v1228 = vrot.slane %v1226, 1
    %v1229 = vsel %vm178, %v1224, %v1228
    %v1230 = vshrl.u32 %v1216, 16
    %v1232 = vor.u32 %v1230, %v1228
    %v1234 = vshrl.u32 %v1210, 16
    %v1236 = vshll.u32 %v1210, 16
    %v1238 = vrot.slane %v1236, 1
    %v1239 = vor.u32 %v1234, %v1238
    %v1241 = vshll.u32 %v1217, 16
    %v1243 = vrot.slane %v1241, 1
    %v1244 = vsel %vm178, %v1239, %v1243
    %v1245 = vshrl.u32 %v1217, 16
    %v1247 = vor.u32 %v1245, %v1243
    %v1248 = vpack.c.b16 %v1214, %v1203
    %v1249 = vpack.c.b16 %v1215, %v1206
    %v1250 = vrot.slane %v1248, 5
    %v1251 = vrot.slane %v1249, 5
    %v1254 = vunpack.c.l.b16 %v1192
    %v1255 = vunpack.c.l.b16 %v1193
    %v1256 = vpack.c.b16 %v1254, %v1254
    %v1257 = vpack.c.b16 %v1255, %v1255
    %vm1258 = vsmask.f32 2304
    %v1260 = vshrl.u32 %v1248, 16
    %v1262 = vrot.slane %v1260, 5
    %v1263 = vshll.u32 %v1248, 16
    %v1265 = vrot.slane %v1263, 6
    %v1266 = vor.u32 %v1262, %v1265
    %v1268 = vshll.u32 %v1256, 16
    %v1270 = vrot.slane %v1268, 6
    %v1271 = vsel %vm1258, %v1266, %v1270
    %v1273 = vshrl.u32 %v1249, 16
    %v1275 = vrot.slane %v1273, 5
    %v1276 = vshll.u32 %v1249, 16
    %v1278 = vrot.slane %v1276, 6
    %v1279 = vor.u32 %v1275, %v1278
    %v1281 = vshll.u32 %v1257, 16
    %v1283 = vrot.slane %v1281, 6
    %v1284 = vsel %vm1258, %v1279, %v1283
    %v1287 = vunpack.c.l.b16 %v1194
    %v1288 = vunpack.c.l.b16 %v1195
    %v1289 = vpack.c.b16 %v1214, %v1287
    %v1290 = vpack.c.b16 %v1215, %v1288
    %v1291 = vrot.slane %v1289, 6
    %v1292 = vrot.slane %v1256, 6
    %v1293 = vsel %vm246, %v1291, %v1292
    %v1294 = vrot.slane %v1290, 6
    %v1295 = vrot.slane %v1257, 6
    %v1296 = vsel %vm246, %v1294, %v1295
    %vm1297 = vcmask 1044480
    %v1298 = vrot.slane %v1208, 3
    %v1299 = vrot.slane %v1209, 3
    %v1300 = vsel %vm1297, %v1298, %v1299
    %v1301 = vrot.slane %v1229, 3
    %v1302 = vrot.slane %v1232, 3
    %v1303 = vsel %vm1297, %v1301, %v1302
    %v1304 = vrot.slane %v1250, 3
    %v1305 = vsel %vm1297, %v1304, %v1304
    %v1306 = vrot.slane %v1266, 3
    %v1307 = vrot.slane %v1271, 3
    %v1308 = vsel %vm1297, %v1306, %v1307
    %v1309 = vrot.slane %v1291, 3
    %v1310 = vrot.slane %v1293, 3
    %v1311 = vsel %vm1297, %v1309, %v1310
    %v1312 = vrot.slane %v1210, 3
    %v1313 = vrot.slane %v1211, 3
    %v1314 = vsel %vm1297, %v1312, %v1313
    %v1315 = vrot.slane %v1244, 3
    %v1316 = vrot.slane %v1247, 3
    %v1317 = vsel %vm1297, %v1315, %v1316
    %v1318 = vrot.slane %v1251, 3
    %v1319 = vsel %vm1297, %v1318, %v1318
    %v1320 = vrot.slane %v1279, 3
    %v1321 = vrot.slane %v1284, 3
    %v1322 = vsel %vm1297, %v1320, %v1321
    %v1323 = vrot.slane %v1294, 3
    %v1324 = vrot.slane %v1296, 3
    %v1325 = vsel %vm1297, %v1323, %v1324
    %v1336 = vld [vmem:[#allocation8] sm:$0xf]
    %v1337 = vld [vmem:[#allocation8 + $0x4] sm:$0xf]
    %v1338 = vld [vmem:[#allocation8 + $0x8] sm:$0xf]
    %v1339 = vld [vmem:[#allocation8 + $0xc] sm:$0xf]
    %v1340 = vld [vmem:[#allocation8 + $0x10] sm:$0xf]
    %v1341 = vld [vmem:[#allocation8 + $0x14] sm:$0xf]
    %v1342 = vld [vmem:[#allocation8 + $0x18] sm:$0xf]
    %v1343 = vld [vmem:[#allocation8 + $0x1c] sm:$0xf]
    %v1344 = vld [vmem:[#allocation8 + $0x20] sm:$0xf]
    %v1345 = vld [vmem:[#allocation8 + $0x24] sm:$0xf]
    %v1346 = vld [vmem:[#allocation8 + $0x28] sm:$0xf]
    %v1347 = vld [vmem:[#allocation8 + $0x2c] sm:$0xf]
    %v1348 = vld [vmem:[#allocation8 + $0x30] sm:$0xf]
    %v1349 = vld [vmem:[#allocation8 + $0x34] sm:$0xf]
    %v1350 = vld [vmem:[#allocation8 + $0x38] sm:$0xf]
    %v1351 = vld [vmem:[#allocation8 + $0x3c] sm:$0xf]
    %v1352 = vld [vmem:[#allocation8 + $0x40] sm:$0xf]
    %v1353 = vld [vmem:[#allocation8 + $0x44] sm:$0xf]
    %v1354 = vld [vmem:[#allocation8 + $0x48] sm:$0xf]
    %v1355 = vld [vmem:[#allocation8 + $0x4c] sm:$0xf]
    %v1356 = vld [vmem:[#allocation8 + $0x50] sm:$0xf]
    %v1357 = vld [vmem:[#allocation8 + $0x54] sm:$0xf]
    %v1358 = vld [vmem:[#allocation8 + $0x58] sm:$0xf]
    %v1359 = vld [vmem:[#allocation8 + $0x5c] sm:$0xf]
    %v1360 = vld [vmem:[#allocation8 + $0x60] sm:$0xf]
    %v1361 = vld [vmem:[#allocation8 + $0x64] sm:$0xf]
    %v1362 = vld [vmem:[#allocation8 + $0x68] sm:$0xf]
    %v1363 = vld [vmem:[#allocation8 + $0x6c] sm:$0xf]
    %v1364 = vld [vmem:[#allocation8 + $0x70] sm:$0xf]
    %v1365 = vld [vmem:[#allocation8 + $0x74] sm:$0xf]
    %v1366 = vld [vmem:[#allocation8 + $0x78] sm:$0xf]
    %v1367 = vld [vmem:[#allocation8 + $0x7c] sm:$0xf]
    %v1368 = vld [vmem:[#allocation8 + $0x80] sm:$0xf]
    %v1369 = vld [vmem:[#allocation8 + $0x84] sm:$0xf]
    %v1370 = vld [vmem:[#allocation8 + $0x88] sm:$0xf]
    %v1371 = vld [vmem:[#allocation8 + $0x8c] sm:$0xf]
    %v1372 = vld [vmem:[#allocation8 + $0x90] sm:$0xf]
    %v1373 = vld [vmem:[#allocation8 + $0x94] sm:$0xf]
    %v1374 = vld [vmem:[#allocation8 + $0x98] sm:$0xf]
    %v1375 = vld [vmem:[#allocation8 + $0x9c] sm:$0xf]
    %v1376 = vld [vmem:[#allocation8 + $0xa0] sm:$0xf]
    %v1377 = vld [vmem:[#allocation8 + $0xa4] sm:$0xf]
    %v1378 = vld [vmem:[#allocation8 + $0xa8] sm:$0xf]
    %v1379 = vld [vmem:[#allocation8 + $0xac] sm:$0xf]
    %v1380 = vld [vmem:[#allocation8 + $0xb0] sm:$0xf]
    %v1381 = vld [vmem:[#allocation8 + $0xb4] sm:$0xf]
    %v1382 = vld [vmem:[#allocation8 + $0xb8] sm:$0xf]
    %v1383 = vld [vmem:[#allocation8 + $0xbc] sm:$0xf]
    %v1384 = vld [vmem:[#allocation8 + $0xc0] sm:$0xf]
    %v1385 = vld [vmem:[#allocation8 + $0xc4] sm:$0xf]
    %v1386 = vld [vmem:[#allocation8 + $0xc8] sm:$0xf]
    %v1387 = vld [vmem:[#allocation8 + $0xcc] sm:$0xf]
    %v1388 = vld [vmem:[#allocation8 + $0xd0] sm:$0xf]
    %v1389 = vld [vmem:[#allocation8 + $0xd4] sm:$0xf]
    %v1390 = vld [vmem:[#allocation8 + $0xd8] sm:$0xf]
    %v1391 = vld [vmem:[#allocation8 + $0xdc] sm:$0xf]
    %v1392 = vld [vmem:[#allocation8 + $0xe0] sm:$0xf]
    %v1393 = vld [vmem:[#allocation8 + $0xe4] sm:$0xf]
    %v1394 = vld [vmem:[#allocation8 + $0xe8] sm:$0xf]
    %v1395 = vld [vmem:[#allocation8 + $0xec] sm:$0xf]
    %v1396 = vld [vmem:[#allocation8 + $0xf0] sm:$0xf]
    %v1397 = vld [vmem:[#allocation8 + $0xf4] sm:$0xf]
    %v1398 = vld [vmem:[#allocation8 + $0xf8] sm:$0xf]
    %v1399 = vld [vmem:[#allocation8 + $0xfc] sm:$0xf]
    %v1400 = vld [vmem:[#allocation8 + $0x100] sm:$0xf]
    %v1401 = vld [vmem:[#allocation8 + $0x104] sm:$0xf]
    %v1402 = vld [vmem:[#allocation8 + $0x108] sm:$0xf]
    %v1403 = vld [vmem:[#allocation8 + $0x10c] sm:$0xf]
    %v1404 = vld [vmem:[#allocation8 + $0x110] sm:$0xf]
    %v1405 = vld [vmem:[#allocation8 + $0x114] sm:$0xf]
    %v1406 = vld [vmem:[#allocation8 + $0x118] sm:$0xf]
    %v1407 = vld [vmem:[#allocation8 + $0x11c] sm:$0xf]
    %v1408 = vld [vmem:[#allocation8 + $0x120] sm:$0xf]
    %v1409 = vld [vmem:[#allocation8 + $0x124] sm:$0xf]
    %v1410 = vld [vmem:[#allocation8 + $0x128] sm:$0xf]
    %v1411 = vld [vmem:[#allocation8 + $0x12c] sm:$0xf]
    %v1412 = vld [vmem:[#allocation8 + $0x130] sm:$0xf]
    %v1413 = vld [vmem:[#allocation8 + $0x134] sm:$0xf]
    %v1414 = vld [vmem:[#allocation8 + $0x138] sm:$0xf]
    %v1415 = vld [vmem:[#allocation8 + $0x13c] sm:$0xf]
    %v1496 = vunpack.c.l.b16 %v1336
    %v1497 = vunpack.c.l.b16 %v1337
    %v1498 = vunpack.c.l.b16 %v1338
    %v1499 = vunpack.c.l.b16 %v1339
    %v1500 = vunpack.c.l.b16 %v1340
    %v1501 = vunpack.c.l.b16 %v1341
    %v1502 = vunpack.c.l.b16 %v1342
    %v1503 = vunpack.c.l.b16 %v1343
    %v1504 = vunpack.c.l.b16 %v1344
    %v1505 = vunpack.c.l.b16 %v1345
    %v1506 = vunpack.c.l.b16 %v1346
    %v1507 = vunpack.c.l.b16 %v1347
    %v1508 = vunpack.c.l.b16 %v1348
    %v1509 = vunpack.c.l.b16 %v1349
    %v1510 = vunpack.c.l.b16 %v1350
    %v1511 = vunpack.c.l.b16 %v1351
    %v1512 = vunpack.c.l.b16 %v1352
    %v1513 = vunpack.c.l.b16 %v1353
    %v1514 = vunpack.c.l.b16 %v1354
    %v1515 = vunpack.c.l.b16 %v1355
    %v1516 = vunpack.c.l.b16 %v1356
    %v1517 = vunpack.c.l.b16 %v1357
    %v1518 = vunpack.c.l.b16 %v1358
    %v1519 = vunpack.c.l.b16 %v1359
    %v1520 = vunpack.c.l.b16 %v1360
    %v1521 = vunpack.c.l.b16 %v1361
    %v1522 = vunpack.c.l.b16 %v1362
    %v1523 = vunpack.c.l.b16 %v1363
    %v1524 = vunpack.c.l.b16 %v1364
    %v1525 = vunpack.c.l.b16 %v1365
    %v1526 = vunpack.c.l.b16 %v1366
    %v1527 = vunpack.c.l.b16 %v1367
    %v1528 = vunpack.c.l.b16 %v1368
    %v1529 = vunpack.c.l.b16 %v1369
    %v1530 = vunpack.c.l.b16 %v1370
    %v1531 = vunpack.c.l.b16 %v1371
    %v1532 = vunpack.c.l.b16 %v1372
    %v1533 = vunpack.c.l.b16 %v1373
    %v1534 = vunpack.c.l.b16 %v1374
    %v1535 = vunpack.c.l.b16 %v1375
    %v1536 = vunpack.c.l.b16 %v1376
    %v1537 = vunpack.c.l.b16 %v1377
    %v1538 = vunpack.c.l.b16 %v1378
    %v1539 = vunpack.c.l.b16 %v1379
    %v1540 = vunpack.c.l.b16 %v1380
    %v1541 = vunpack.c.l.b16 %v1381
    %v1542 = vunpack.c.l.b16 %v1382
    %v1543 = vunpack.c.l.b16 %v1383
    %v1544 = vunpack.c.l.b16 %v1384
    %v1545 = vunpack.c.l.b16 %v1385
    %v1546 = vunpack.c.l.b16 %v1386
    %v1547 = vunpack.c.l.b16 %v1387
    %v1548 = vunpack.c.l.b16 %v1388
    %v1549 = vunpack.c.l.b16 %v1389
    %v1550 = vunpack.c.l.b16 %v1390
    %v1551 = vunpack.c.l.b16 %v1391
    %v1552 = vunpack.c.l.b16 %v1392
    %v1553 = vunpack.c.l.b16 %v1393
    %v1554 = vunpack.c.l.b16 %v1394
    %v1555 = vunpack.c.l.b16 %v1395
    %v1556 = vunpack.c.l.b16 %v1396
    %v1557 = vunpack.c.l.b16 %v1397
    %v1558 = vunpack.c.l.b16 %v1398
    %v1559 = vunpack.c.l.b16 %v1399
    %v1560 = vunpack.c.l.b16 %v1400
    %v1561 = vunpack.c.l.b16 %v1401
    %v1562 = vunpack.c.l.b16 %v1402
    %v1563 = vunpack.c.l.b16 %v1403
    %v1564 = vunpack.c.l.b16 %v1404
    %v1565 = vunpack.c.l.b16 %v1405
    %v1566 = vunpack.c.l.b16 %v1406
    %v1567 = vunpack.c.l.b16 %v1407
    %v1568 = vunpack.c.l.b16 %v1408
    %v1569 = vunpack.c.l.b16 %v1409
    %v1570 = vunpack.c.l.b16 %v1410
    %v1571 = vunpack.c.l.b16 %v1411
    %v1572 = vunpack.c.l.b16 %v1412
    %v1573 = vunpack.c.l.b16 %v1413
    %v1574 = vunpack.c.l.b16 %v1414
    %v1575 = vunpack.c.l.b16 %v1415
    %v1576 = vpack.c.b16 %v1497, %v1496
    %v1577 = vpack.c.b16 %v1499, %v1498
    %v1578 = vpack.c.b16 %v1501, %v1500
    %v1579 = vpack.c.b16 %v1503, %v1502
    %v1580 = vpack.c.b16 %v1505, %v1504
    %v1581 = vpack.c.b16 %v1507, %v1506
    %v1582 = vpack.c.b16 %v1509, %v1508
    %v1583 = vpack.c.b16 %v1511, %v1510
    %v1584 = vpack.c.b16 %v1513, %v1512
    %v1585 = vpack.c.b16 %v1515, %v1514
    %v1586 = vpack.c.b16 %v1517, %v1516
    %v1587 = vpack.c.b16 %v1519, %v1518
    %v1588 = vpack.c.b16 %v1521, %v1520
    %v1589 = vpack.c.b16 %v1523, %v1522
    %v1590 = vpack.c.b16 %v1525, %v1524
    %v1591 = vpack.c.b16 %v1527, %v1526
    %v1592 = vpack.c.b16 %v1529, %v1528
    %v1593 = vpack.c.b16 %v1531, %v1530
    %v1594 = vpack.c.b16 %v1533, %v1532
    %v1595 = vpack.c.b16 %v1535, %v1534
    %v1596 = vpack.c.b16 %v1537, %v1536
    %v1597 = vpack.c.b16 %v1539, %v1538
    %v1598 = vpack.c.b16 %v1541, %v1540
    %v1599 = vpack.c.b16 %v1543, %v1542
    %v1600 = vpack.c.b16 %v1545, %v1544
    %v1601 = vpack.c.b16 %v1547, %v1546
    %v1602 = vpack.c.b16 %v1549, %v1548
    %v1603 = vpack.c.b16 %v1551, %v1550
    %v1604 = vpack.c.b16 %v1553, %v1552
    %v1605 = vpack.c.b16 %v1555, %v1554
    %v1606 = vpack.c.b16 %v1557, %v1556
    %v1607 = vpack.c.b16 %v1559, %v1558
    %v1608 = vpack.c.b16 %v1561, %v1560
    %v1609 = vpack.c.b16 %v1563, %v1562
    %v1610 = vpack.c.b16 %v1565, %v1564
    %v1611 = vpack.c.b16 %v1567, %v1566
    %v1612 = vpack.c.b16 %v1569, %v1568
    %v1613 = vpack.c.b16 %v1571, %v1570
    %v1614 = vpack.c.b16 %v1573, %v1572
    %v1615 = vpack.c.b16 %v1575, %v1574
    %1656 = vmatpush.bf16.msra.mxu0 %v1583
    %1657 = vmatpush.bf16.msra.mxu0 %v1582
    %1658 = vmatpush.bf16.msra.mxu0 %v1581
    %1659 = vmatpush.bf16.msra.mxu0 %v1580
    %1660 = vmatpush.bf16.msra.mxu0 %v1579
    %1661 = vmatpush.bf16.msra.mxu0 %v1578
    %1662 = vmatpush.bf16.msra.mxu0 %v1577
    %1663 = vmatpush.bf16.msra.mxu0 %v1576
    %1664 = vmatmul.bf16.gmra.mxu0 %v1300
    %v1665 = vpop.f32.mrf.mxu0
    %v1666 = vadd.f32 0.0, %v1665
    %v1667 = vpop.f32.mrf.mxu0
    %v1668 = vadd.f32 0.0, %v1667
    %1669 = vmatmul.bf16.gmra.mxu0 %v1314
    %v1670 = vpop.f32.mrf.mxu0
    %v1671 = vadd.f32 0.0, %v1670
    %v1672 = vpop.f32.mrf.mxu0
    %v1673 = vadd.f32 0.0, %v1672
    %1674 = vdwg.mxu0
    %1675 = vmatpush.bf16.msra.mxu0 %v1591
    %1676 = vmatpush.bf16.msra.mxu0 %v1590
    %1677 = vmatpush.bf16.msra.mxu0 %v1589
    %1678 = vmatpush.bf16.msra.mxu0 %v1588
    %1679 = vmatpush.bf16.msra.mxu0 %v1587
    %1680 = vmatpush.bf16.msra.mxu0 %v1586
    %1681 = vmatpush.bf16.msra.mxu0 %v1585
    %1682 = vmatpush.bf16.msra.mxu0 %v1584
    %1683 = vmatmul.bf16.gmra.mxu0 %v1303
    %v1684 = vpop.f32.mrf.mxu0
    %v1685 = vadd.f32 %v1666, %v1684
    %v1686 = vpop.f32.mrf.mxu0
    %v1687 = vadd.f32 %v1668, %v1686
    %1688 = vmatmul.bf16.gmra.mxu0 %v1317
    %v1689 = vpop.f32.mrf.mxu0
    %v1690 = vadd.f32 %v1671, %v1689
    %v1691 = vpop.f32.mrf.mxu0
    %v1692 = vadd.f32 %v1673, %v1691
    %1693 = vdwg.mxu0
    %1694 = vmatpush.bf16.msra.mxu0 %v1599
    %1695 = vmatpush.bf16.msra.mxu0 %v1598
    %1696 = vmatpush.bf16.msra.mxu0 %v1597
    %1697 = vmatpush.bf16.msra.mxu0 %v1596
    %1698 = vmatpush.bf16.msra.mxu0 %v1595
    %1699 = vmatpush.bf16.msra.mxu0 %v1594
    %1700 = vmatpush.bf16.msra.mxu0 %v1593
    %1701 = vmatpush.bf16.msra.mxu0 %v1592
    %1702 = vmatmul.bf16.gmra.mxu0 %v1305
    %v1703 = vpop.f32.mrf.mxu0
    %v1704 = vadd.f32 %v1685, %v1703
    %v1705 = vpop.f32.mrf.mxu0
    %v1706 = vadd.f32 %v1687, %v1705
    %1707 = vmatmul.bf16.gmra.mxu0 %v1319
    %v1708 = vpop.f32.mrf.mxu0
    %v1709 = vadd.f32 %v1690, %v1708
    %v1710 = vpop.f32.mrf.mxu0
    %v1711 = vadd.f32 %v1692, %v1710
    %1712 = vdwg.mxu0
    %1713 = vmatpush.bf16.msra.mxu0 %v1607
    %1714 = vmatpush.bf16.msra.mxu0 %v1606
    %1715 = vmatpush.bf16.msra.mxu0 %v1605
    %1716 = vmatpush.bf16.msra.mxu0 %v1604
    %1717 = vmatpush.bf16.msra.mxu0 %v1603
    %1718 = vmatpush.bf16.msra.mxu0 %v1602
    %1719 = vmatpush.bf16.msra.mxu0 %v1601
    %1720 = vmatpush.bf16.msra.mxu0 %v1600
    %1721 = vmatmul.bf16.gmra.mxu0 %v1308
    %v1722 = vpop.f32.mrf.mxu0
    %v1723 = vadd.f32 %v1704, %v1722
    %v1724 = vpop.f32.mrf.mxu0
    %v1725 = vadd.f32 %v1706, %v1724
    %1726 = vmatmul.bf16.gmra.mxu0 %v1322
    %v1727 = vpop.f32.mrf.mxu0
    %v1728 = vadd.f32 %v1709, %v1727
    %v1729 = vpop.f32.mrf.mxu0
    %v1730 = vadd.f32 %v1711, %v1729
    %1731 = vdwg.mxu0
    %1732 = vmatpush.bf16.msra.mxu0 %v1615
    %1733 = vmatpush.bf16.msra.mxu0 %v1614
    %1734 = vmatpush.bf16.msra.mxu0 %v1613
    %1735 = vmatpush.bf16.msra.mxu0 %v1612
    %1736 = vmatpush.bf16.msra.mxu0 %v1611
    %1737 = vmatpush.bf16.msra.mxu0 %v1610
    %1738 = vmatpush.bf16.msra.mxu0 %v1609
    %1739 = vmatpush.bf16.msra.mxu0 %v1608
    %1740 = vmatmul.bf16.gmra.mxu0 %v1311
    %v1741 = vpop.f32.mrf.mxu0
    %v1742 = vadd.f32 %v1723, %v1741
    %v1743 = vpop.f32.mrf.mxu0
    %v1744 = vadd.f32 %v1725, %v1743
    %1745 = vmatmul.bf16.gmra.mxu0 %v1325
    %v1746 = vpop.f32.mrf.mxu0
    %v1747 = vadd.f32 %v1728, %v1746
    %v1748 = vpop.f32.mrf.mxu0
    %v1749 = vadd.f32 %v1730, %v1748
    %1750 = vdwg.mxu0
    %v1751 = vadd.f32 %v1742, %v1744
    %v1752 = vadd.f32 %v1751, %v1747
    %v1753 = vadd.f32 %v1752, %v1749
    %v1754 = vrot.slane %v1753, 4
    %v1755 = vadd.f32 %v1753, %v1754
    %v1756 = vrot.slane %v1755, 2
    %v1757 = vadd.f32 %v1755, %v1756
    %v1758 = vrot.slane %v1757, 1
    %v1759 = vadd.f32 %v1757, %v1758
    %v1760 = vmul.f32 %v1759, 0.03125
    %v1761 = vmul.f32 %v1742, %v1742
    %v1762 = vmul.f32 %v1744, %v1744
    %v1763 = vmul.f32 %v1747, %v1747
    %v1764 = vmul.f32 %v1749, %v1749
    %v1765 = vadd.f32 %v1761, %v1762
    %v1766 = vadd.f32 %v1765, %v1763
    %v1767 = vadd.f32 %v1766, %v1764
    %v1768 = vrot.slane %v1767, 4
    %v1769 = vadd.f32 %v1767, %v1768
    %v1770 = vrot.slane %v1769, 2
    %v1771 = vadd.f32 %v1769, %v1770
    %v1772 = vrot.slane %v1771, 1
    %v1773 = vadd.f32 %v1771, %v1772
    %v1774 = vmul.f32 %v1773, 0.03125
    %v1775 = vmul.f32 %v1760, %v1760
    %v1776 = vsub.f32 %v1774, %v1775
    %v1777 = vmax.f32 %v1776, 0.0
    %v1778 = vld [vmem:[%s5] sm:$0x1]
    %v1779 = vadd.f32 %v1777, 1e-05
    %v1780 = vrsqrt.pop %v1779
    %v1781 = vmul.f32 %v1780, %v1779
    %v1782 = vmul.f32 %v1781, %v1780
    %v1783 = vmul.f32 0.5, %v1782
    %v1784 = vsub.f32 1.5, %v1783
    %v1785 = vmul.f32 %v1780, %v1784
    %vm1786 = vweird.f32 %v1779
    %vm1787 = vweird.f32 %v1780
    %vm1788 = vmor %vm1786, %vm1787
    %v1789 = vsel %vm1788, %v1780, %v1785
    %v1790 = vmul.f32 %v1778, %v1789
    %v1791 = vld [vmem:[%s6] sm:$0x1]
    %v1792 = vmul.f32 %v1760, %v1790
    %v1793 = vsub.f32 %v1791, %v1792
    %v1795 = vperm.slane %v1790, 0
    %v1797 = vmul.f32 %v1742, %v1795
    %v1798 = vmul.f32 %v1744, %v1795
    %v1799 = vmul.f32 %v1747, %v1795
    %v1800 = vmul.f32 %v1749, %v1795
    %v1802 = vperm.slane %v1793, 0
    %v1804 = vadd.f32 %v1797, %v1802
    %v1805 = vadd.f32 %v1798, %v1802
    %v1806 = vadd.f32 %v1799, %v1802
    %v1807 = vadd.f32 %v1800, %v1802
    %v1808 = vmax.f32 %v1804, 0.0
    %v1809 = vmax.f32 %v1805, 0.0
    %v1810 = vmax.f32 %v1806, 0.0
    %v1811 = vmax.f32 %v1807, 0.0
    %v1812 = vpack.c.bf16 %v1808, %v1808
    %v1813 = vpack.c.bf16 %v1809, %v1809
    %v1814 = vpack.c.bf16 %v1810, %v1810
    %v1815 = vpack.c.bf16 %v1811, %v1811
    %1816 = vst [vmem:[#allocation2 + $0x8] sm:$0xf] %v1812
    %1817 = vst [vmem:[#allocation2 + $0xc] sm:$0xf] %v1813
    %1818 = vst [vmem:[#allocation2 + $0x20] sm:$0xf] %v1814
    %1819 = vst [vmem:[#allocation2 + $0x24] sm:$0xf] %v1815
    %v1820 = vld [vmem:[#allocation2 + $0x4] sm:$0x8]
    %v1821 = vld [vmem:[#allocation2 + $0x8] sm:$0xf]
    %v1822 = vld [vmem:[#allocation2 + $0xc] sm:$0xf]
    %v1823 = vld [vmem:[#allocation2 + $0x1c] sm:$0x8]
    %v1824 = vld [vmem:[#allocation2 + $0x20] sm:$0xf]
    %v1825 = vld [vmem:[#allocation2 + $0x24] sm:$0xf]
    %v1826 = vld [vmem:[#allocation2 + $0x10] sm:$0x1]
    %v1827 = vld [vmem:[#allocation2 + $0x28] sm:$0x1]
    %v1834 = vunpack.c.l.b16 %v1820
    %v1835 = vunpack.c.l.b16 %v1821
    %v1836 = vunpack.c.l.b16 %v1822
    %v1837 = vunpack.c.l.b16 %v1823
    %v1838 = vunpack.c.l.b16 %v1824
    %v1839 = vunpack.c.l.b16 %v1825
    %v1840 = vpack.c.b16 %v1835, %v1834
    %v1841 = vpack.c.b16 %v1836, %v1836
    %v1842 = vpack.c.b16 %v1838, %v1837
    %v1843 = vpack.c.b16 %v1839, %v1839
    %v1844 = vpack.c.b16 %v1836, %v1835
    %v1845 = vpack.c.b16 %v1839, %v1838
    %v1847 = vshrl.u32 %v1844, 16
    %v1849 = vrot.slane %v1847, 4
    %v1850 = vshll.u32 %v1844, 16
    %v1852 = vrot.slane %v1850, 5
    %v1853 = vor.u32 %v1849, %v1852
    %v1855 = vshrl.u32 %v1845, 16
    %v1857 = vrot.slane %v1855, 4
    %v1858 = vshll.u32 %v1845, 16
    %v1860 = vrot.slane %v1858, 5
    %v1861 = vor.u32 %v1857, %v1860
    %v1864 = vunpack.c.l.b16 %v1826
    %v1865 = vunpack.c.l.b16 %v1827
    %v1866 = vpack.c.b16 %v1864, %v1864
    %v1867 = vpack.c.b16 %v1865, %v1865
    %vm1868 = vcmask 1042432
    %v1869 = vrot.slane %v1844, 5
    %v1870 = vrot.slane %v1866, 5
    %v1871 = vsel %vm1868, %v1869, %v1870
    %v1872 = vrot.slane %v1845, 5
    %v1873 = vrot.slane %v1867, 5
    %v1874 = vsel %vm1868, %v1872, %v1873
    %vm1875 = vsmask.f32 4352
    %v1877 = vshrl.u32 %v1840, 16
    %v1879 = vrot.slane %v1877, 3
    %v1880 = vshll.u32 %v1840, 16
    %v1882 = vrot.slane %v1880, 4
    %v1883 = vor.u32 %v1879, %v1882
    %v1885 = vshrl.u32 %v1841, 16
    %v1887 = vrot.slane %v1885, 3
    %v1888 = vshll.u32 %v1841, 16
    %v1890 = vrot.slane %v1888, 4
    %v1891 = vor.u32 %v1887, %v1890
    %v1892 = vsel %vm1875, %v1883, %v1891
    %v1894 = vshrl.u32 %v1853, 16
    %v1896 = vrot.slane %v1894, 3
    %v1897 = vshll.u32 %v1853, 16
    %v1899 = vrot.slane %v1897, 4
    %v1900 = vor.u32 %v1896, %v1899
    %v1901 = vsel %vm1875, %v1900, %v1900
    %v1903 = vshrl.u32 %v1869, 16
    %v1905 = vrot.slane %v1903, 3
    %v1906 = vshll.u32 %v1869, 16
    %v1908 = vrot.slane %v1906, 4
    %v1909 = vor.u32 %v1905, %v1908
    %v1911 = vshrl.u32 %v1871, 16
    %v1913 = vrot.slane %v1911, 3
    %v1914 = vshll.u32 %v1871, 16
    %v1916 = vrot.slane %v1914, 4
    %v1917 = vor.u32 %v1913, %v1916
    %v1918 = vsel %vm1875, %v1909, %v1917
    %v1920 = vshrl.u32 %v1842, 16
    %v1922 = vrot.slane %v1920, 3
    %v1923 = vshll.u32 %v1842, 16
    %v1925 = vrot.slane %v1923, 4
    %v1926 = vor.u32 %v1922, %v1925
    %v1928 = vshrl.u32 %v1843, 16
    %v1930 = vrot.slane %v1928, 3
    %v1931 = vshll.u32 %v1843, 16
    %v1933 = vrot.slane %v1931, 4
    %v1934 = vor.u32 %v1930, %v1933
    %v1935 = vsel %vm1875, %v1926, %v1934
    %v1937 = vshrl.u32 %v1861, 16
    %v1939 = vrot.slane %v1937, 3
    %v1940 = vshll.u32 %v1861, 16
    %v1942 = vrot.slane %v1940, 4
    %v1943 = vor.u32 %v1939, %v1942
    %v1944 = vsel %vm1875, %v1943, %v1943
    %v1946 = vshrl.u32 %v1872, 16
    %v1948 = vrot.slane %v1946, 3
    %v1949 = vshll.u32 %v1872, 16
    %v1951 = vrot.slane %v1949, 4
    %v1952 = vor.u32 %v1948, %v1951
    %v1954 = vshrl.u32 %v1874, 16
    %v1956 = vrot.slane %v1954, 3
    %v1957 = vshll.u32 %v1874, 16
    %v1959 = vrot.slane %v1957, 4
    %v1960 = vor.u32 %v1956, %v1959
    %v1961 = vsel %vm1875, %v1952, %v1960
    %v1968 = vld [vmem:[#allocation9] sm:$0xf]
    %v1969 = vld [vmem:[#allocation9 + $0x4] sm:$0xf]
    %v1970 = vld [vmem:[#allocation9 + $0x8] sm:$0xf]
    %v1971 = vld [vmem:[#allocation9 + $0xc] sm:$0xf]
    %v1972 = vld [vmem:[#allocation9 + $0x10] sm:$0xf]
    %v1973 = vld [vmem:[#allocation9 + $0x14] sm:$0xf]
    %v1974 = vld [vmem:[#allocation9 + $0x18] sm:$0xf]
    %v1975 = vld [vmem:[#allocation9 + $0x1c] sm:$0xf]
    %v1976 = vld [vmem:[#allocation9 + $0x20] sm:$0xf]
    %v1977 = vld [vmem:[#allocation9 + $0x24] sm:$0xf]
    %v1978 = vld [vmem:[#allocation9 + $0x28] sm:$0xf]
    %v1979 = vld [vmem:[#allocation9 + $0x2c] sm:$0xf]
    %v1980 = vld [vmem:[#allocation9 + $0x30] sm:$0xf]
    %v1981 = vld [vmem:[#allocation9 + $0x34] sm:$0xf]
    %v1982 = vld [vmem:[#allocation9 + $0x38] sm:$0xf]
    %v1983 = vld [vmem:[#allocation9 + $0x3c] sm:$0xf]
    %v1984 = vld [vmem:[#allocation9 + $0x40] sm:$0xf]
    %v1985 = vld [vmem:[#allocation9 + $0x44] sm:$0xf]
    %v1986 = vld [vmem:[#allocation9 + $0x48] sm:$0xf]
    %v1987 = vld [vmem:[#allocation9 + $0x4c] sm:$0xf]
    %v1988 = vld [vmem:[#allocation9 + $0x50] sm:$0xf]
    %v1989 = vld [vmem:[#allocation9 + $0x54] sm:$0xf]
    %v1990 = vld [vmem:[#allocation9 + $0x58] sm:$0xf]
    %v1991 = vld [vmem:[#allocation9 + $0x5c] sm:$0xf]
    %v1992 = vld [vmem:[#allocation9 + $0x60] sm:$0xf]
    %v1993 = vld [vmem:[#allocation9 + $0x64] sm:$0xf]
    %v1994 = vld [vmem:[#allocation9 + $0x68] sm:$0xf]
    %v1995 = vld [vmem:[#allocation9 + $0x6c] sm:$0xf]
    %v1996 = vld [vmem:[#allocation9 + $0x70] sm:$0xf]
    %v1997 = vld [vmem:[#allocation9 + $0x74] sm:$0xf]
    %v1998 = vld [vmem:[#allocation9 + $0x78] sm:$0xf]
    %v1999 = vld [vmem:[#allocation9 + $0x7c] sm:$0xf]
    %v2000 = vld [vmem:[#allocation9 + $0x80] sm:$0xf]
    %v2001 = vld [vmem:[#allocation9 + $0x84] sm:$0xf]
    %v2002 = vld [vmem:[#allocation9 + $0x88] sm:$0xf]
    %v2003 = vld [vmem:[#allocation9 + $0x8c] sm:$0xf]
    %v2004 = vld [vmem:[#allocation9 + $0x90] sm:$0xf]
    %v2005 = vld [vmem:[#allocation9 + $0x94] sm:$0xf]
    %v2006 = vld [vmem:[#allocation9 + $0x98] sm:$0xf]
    %v2007 = vld [vmem:[#allocation9 + $0x9c] sm:$0xf]
    %v2008 = vld [vmem:[#allocation9 + $0xa0] sm:$0xf]
    %v2009 = vld [vmem:[#allocation9 + $0xa4] sm:$0xf]
    %v2010 = vld [vmem:[#allocation9 + $0xa8] sm:$0xf]
    %v2011 = vld [vmem:[#allocation9 + $0xac] sm:$0xf]
    %v2012 = vld [vmem:[#allocation9 + $0xb0] sm:$0xf]
    %v2013 = vld [vmem:[#allocation9 + $0xb4] sm:$0xf]
    %v2014 = vld [vmem:[#allocation9 + $0xb8] sm:$0xf]
    %v2015 = vld [vmem:[#allocation9 + $0xbc] sm:$0xf]
    %v2064 = vunpack.c.l.b16 %v1968
    %v2065 = vunpack.c.l.b16 %v1969
    %v2066 = vunpack.c.l.b16 %v1970
    %v2067 = vunpack.c.l.b16 %v1971
    %v2068 = vunpack.c.l.b16 %v1972
    %v2069 = vunpack.c.l.b16 %v1973
    %v2070 = vunpack.c.l.b16 %v1974
    %v2071 = vunpack.c.l.b16 %v1975
    %v2072 = vunpack.c.l.b16 %v1976
    %v2073 = vunpack.c.l.b16 %v1977
    %v2074 = vunpack.c.l.b16 %v1978
    %v2075 = vunpack.c.l.b16 %v1979
    %v2076 = vunpack.c.l.b16 %v1980
    %v2077 = vunpack.c.l.b16 %v1981
    %v2078 = vunpack.c.l.b16 %v1982
    %v2079 = vunpack.c.l.b16 %v1983
    %v2080 = vunpack.c.l.b16 %v1984
    %v2081 = vunpack.c.l.b16 %v1985
    %v2082 = vunpack.c.l.b16 %v1986
    %v2083 = vunpack.c.l.b16 %v1987
    %v2084 = vunpack.c.l.b16 %v1988
    %v2085 = vunpack.c.l.b16 %v1989
    %v2086 = vunpack.c.l.b16 %v1990
    %v2087 = vunpack.c.l.b16 %v1991
    %v2088 = vunpack.c.l.b16 %v1992
    %v2089 = vunpack.c.l.b16 %v1993
    %v2090 = vunpack.c.l.b16 %v1994
    %v2091 = vunpack.c.l.b16 %v1995
    %v2092 = vunpack.c.l.b16 %v1996
    %v2093 = vunpack.c.l.b16 %v1997
    %v2094 = vunpack.c.l.b16 %v1998
    %v2095 = vunpack.c.l.b16 %v1999
    %v2096 = vunpack.c.l.b16 %v2000
    %v2097 = vunpack.c.l.b16 %v2001
    %v2098 = vunpack.c.l.b16 %v2002
    %v2099 = vunpack.c.l.b16 %v2003
    %v2100 = vunpack.c.l.b16 %v2004
    %v2101 = vunpack.c.l.b16 %v2005
    %v2102 = vunpack.c.l.b16 %v2006
    %v2103 = vunpack.c.l.b16 %v2007
    %v2104 = vunpack.c.l.b16 %v2008
    %v2105 = vunpack.c.l.b16 %v2009
    %v2106 = vunpack.c.l.b16 %v2010
    %v2107 = vunpack.c.l.b16 %v2011
    %v2108 = vunpack.c.l.b16 %v2012
    %v2109 = vunpack.c.l.b16 %v2013
    %v2110 = vunpack.c.l.b16 %v2014
    %v2111 = vunpack.c.l.b16 %v2015
    %v2112 = vpack.c.b16 %v2065, %v2064
    %v2113 = vpack.c.b16 %v2067, %v2066
    %v2114 = vpack.c.b16 %v2069, %v2068
    %v2115 = vpack.c.b16 %v2071, %v2070
    %v2116 = vpack.c.b16 %v2073, %v2072
    %v2117 = vpack.c.b16 %v2075, %v2074
    %v2118 = vpack.c.b16 %v2077, %v2076
    %v2119 = vpack.c.b16 %v2079, %v2078
    %v2120 = vpack.c.b16 %v2081, %v2080
    %v2121 = vpack.c.b16 %v2083, %v2082
    %v2122 = vpack.c.b16 %v2085, %v2084
    %v2123 = vpack.c.b16 %v2087, %v2086
    %v2124 = vpack.c.b16 %v2089, %v2088
    %v2125 = vpack.c.b16 %v2091, %v2090
    %v2126 = vpack.c.b16 %v2093, %v2092
    %v2127 = vpack.c.b16 %v2095, %v2094
    %v2128 = vpack.c.b16 %v2097, %v2096
    %v2129 = vpack.c.b16 %v2099, %v2098
    %v2130 = vpack.c.b16 %v2101, %v2100
    %v2131 = vpack.c.b16 %v2103, %v2102
    %v2132 = vpack.c.b16 %v2105, %v2104
    %v2133 = vpack.c.b16 %v2107, %v2106
    %v2134 = vpack.c.b16 %v2109, %v2108
    %v2135 = vpack.c.b16 %v2111, %v2110
    %2160 = vmatpush.bf16.msra.mxu0 %v2119
    %2161 = vmatpush.bf16.msra.mxu0 %v2118
    %2162 = vmatpush.bf16.msra.mxu0 %v2117
    %2163 = vmatpush.bf16.msra.mxu0 %v2116
    %2164 = vmatpush.bf16.msra.mxu0 %v2115
    %2165 = vmatpush.bf16.msra.mxu0 %v2114
    %2166 = vmatpush.bf16.msra.mxu0 %v2113
    %2167 = vmatpush.bf16.msra.mxu0 %v2112
    %2168 = vmatmul.bf16.gmra.mxu0 %v1892
    %v2169 = vpop.f32.mrf.mxu0
    %v2170 = vadd.f32 0.0, %v2169
    %v2171 = vpop.f32.mrf.mxu0
    %v2172 = vadd.f32 0.0, %v2171
    %2173 = vmatmul.bf16.gmra.mxu0 %v1935
    %v2174 = vpop.f32.mrf.mxu0
    %v2175 = vadd.f32 0.0, %v2174
    %v2176 = vpop.f32.mrf.mxu0
    %v2177 = vadd.f32 0.0, %v2176
    %2178 = vdwg.mxu0
    %2179 = vmatpush.bf16.msra.mxu0 %v2127
    %2180 = vmatpush.bf16.msra.mxu0 %v2126
    %2181 = vmatpush.bf16.msra.mxu0 %v2125
    %2182 = vmatpush.bf16.msra.mxu0 %v2124
    %2183 = vmatpush.bf16.msra.mxu0 %v2123
    %2184 = vmatpush.bf16.msra.mxu0 %v2122
    %2185 = vmatpush.bf16.msra.mxu0 %v2121
    %2186 = vmatpush.bf16.msra.mxu0 %v2120
    %2187 = vmatmul.bf16.gmra.mxu0 %v1901
    %v2188 = vpop.f32.mrf.mxu0
    %v2189 = vadd.f32 %v2170, %v2188
    %v2190 = vpop.f32.mrf.mxu0
    %v2191 = vadd.f32 %v2172, %v2190
    %2192 = vmatmul.bf16.gmra.mxu0 %v1944
    %v2193 = vpop.f32.mrf.mxu0
    %v2194 = vadd.f32 %v2175, %v2193
    %v2195 = vpop.f32.mrf.mxu0
    %v2196 = vadd.f32 %v2177, %v2195
    %2197 = vdwg.mxu0
    %2198 = vmatpush.bf16.msra.mxu0 %v2135
    %2199 = vmatpush.bf16.msra.mxu0 %v2134
    %2200 = vmatpush.bf16.msra.mxu0 %v2133
    %2201 = vmatpush.bf16.msra.mxu0 %v2132
    %2202 = vmatpush.bf16.msra.mxu0 %v2131
    %2203 = vmatpush.bf16.msra.mxu0 %v2130
    %2204 = vmatpush.bf16.msra.mxu0 %v2129
    %2205 = vmatpush.bf16.msra.mxu0 %v2128
    %2206 = vmatmul.bf16.gmra.mxu0 %v1918
    %v2207 = vpop.f32.mrf.mxu0
    %v2208 = vadd.f32 %v2189, %v2207
    %v2209 = vpop.f32.mrf.mxu0
    %v2210 = vadd.f32 %v2191, %v2209
    %2211 = vmatmul.bf16.gmra.mxu0 %v1961
    %v2212 = vpop.f32.mrf.mxu0
    %v2213 = vadd.f32 %v2194, %v2212
    %v2214 = vpop.f32.mrf.mxu0
    %v2215 = vadd.f32 %v2196, %v2214
    %2216 = vdwg.mxu0
    %v2217 = vadd.f32 %v2208, %v2210
    %v2218 = vadd.f32 %v2217, %v2213
    %v2219 = vadd.f32 %v2218, %v2215
    %v2220 = vrot.slane %v2219, 4
    %v2221 = vadd.f32 %v2219, %v2220
    %v2222 = vrot.slane %v2221, 2
    %v2223 = vadd.f32 %v2221, %v2222
    %v2224 = vrot.slane %v2223, 1
    %v2225 = vadd.f32 %v2223, %v2224
    %v2226 = vmul.f32 %v2225, 0.03125
    %v2227 = vmul.f32 %v2208, %v2208
    %v2228 = vmul.f32 %v2210, %v2210
    %v2229 = vmul.f32 %v2213, %v2213
    %v2230 = vmul.f32 %v2215, %v2215
    %v2231 = vadd.f32 %v2227, %v2228
    %v2232 = vadd.f32 %v2231, %v2229
    %v2233 = vadd.f32 %v2232, %v2230
    %v2234 = vrot.slane %v2233, 4
    %v2235 = vadd.f32 %v2233, %v2234
    %v2236 = vrot.slane %v2235, 2
    %v2237 = vadd.f32 %v2235, %v2236
    %v2238 = vrot.slane %v2237, 1
    %v2239 = vadd.f32 %v2237, %v2238
    %v2240 = vmul.f32 %v2239, 0.03125
    %v2241 = vmul.f32 %v2226, %v2226
    %v2242 = vsub.f32 %v2240, %v2241
    %v2243 = vmax.f32 %v2242, 0.0
    %v2244 = vld [vmem:[%s8] sm:$0x1]
    %v2245 = vadd.f32 %v2243, 1e-05
    %v2246 = vrsqrt.pop %v2245
    %v2247 = vmul.f32 %v2246, %v2245
    %v2248 = vmul.f32 %v2247, %v2246
    %v2249 = vmul.f32 0.5, %v2248
    %v2250 = vsub.f32 1.5, %v2249
    %v2251 = vmul.f32 %v2246, %v2250
    %vm2252 = vweird.f32 %v2245
    %vm2253 = vweird.f32 %v2246
    %vm2254 = vmor %vm2252, %vm2253
    %v2255 = vsel %vm2254, %v2246, %v2251
    %v2256 = vmul.f32 %v2244, %v2255
    %v2257 = vld [vmem:[%s9] sm:$0x1]
    %v2258 = vmul.f32 %v2226, %v2256
    %v2259 = vsub.f32 %v2257, %v2258
    %v2261 = vperm.slane %v2256, 0
    %v2263 = vmul.f32 %v2208, %v2261
    %v2264 = vmul.f32 %v2210, %v2261
    %v2265 = vmul.f32 %v2213, %v2261
    %v2266 = vmul.f32 %v2215, %v2261
    %v2268 = vperm.slane %v2259, 0
    %v2270 = vadd.f32 %v2263, %v2268
    %v2271 = vadd.f32 %v2264, %v2268
    %v2272 = vadd.f32 %v2265, %v2268
    %v2273 = vadd.f32 %v2266, %v2268
    %v2274 = vld [vmem:[#allocation11] sm:$0xf]
    %v2275 = vld [vmem:[#allocation11 + $0x4] sm:$0xf]
    %v2276 = vld [vmem:[#allocation11 + $0x8] sm:$0xf]
    %v2277 = vld [vmem:[#allocation11 + $0xc] sm:$0xf]
    %v2278 = vld [vmem:[#allocation11 + $0x10] sm:$0xf]
    %v2279 = vld [vmem:[#allocation11 + $0x14] sm:$0xf]
    %v2280 = vld [vmem:[#allocation11 + $0x18] sm:$0xf]
    %v2281 = vld [vmem:[#allocation11 + $0x1c] sm:$0xf]
    %v2282 = vld [vmem:[#allocation11 + $0x20] sm:$0xf]
    %v2283 = vld [vmem:[#allocation11 + $0x24] sm:$0xf]
    %v2284 = vld [vmem:[#allocation11 + $0x28] sm:$0xf]
    %v2285 = vld [vmem:[#allocation11 + $0x2c] sm:$0xf]
    %v2286 = vld [vmem:[#allocation11 + $0x30] sm:$0xf]
    %v2287 = vld [vmem:[#allocation11 + $0x34] sm:$0xf]
    %v2288 = vld [vmem:[#allocation11 + $0x38] sm:$0xf]
    %v2289 = vld [vmem:[#allocation11 + $0x3c] sm:$0xf]
    %v2294 = vunpack.c.l.b16 %v132
    %v2295 = vunpack.c.l.b16 %v133
    %v2296 = vunpack.c.l.b16 %v134
    %v2297 = vunpack.c.l.b16 %v135
    %v2298 = vpack.c.b16 %v2295, %v2294
    %v2299 = vpack.c.b16 %v2297, %v2296
    %v2318 = vunpack.c.l.b16 %v2274
    %v2319 = vunpack.c.l.b16 %v2275
    %v2320 = vunpack.c.l.b16 %v2276
    %v2321 = vunpack.c.l.b16 %v2277
    %v2322 = vunpack.c.l.b16 %v2278
    %v2323 = vunpack.c.l.b16 %v2279
    %v2324 = vunpack.c.l.b16 %v2280
    %v2325 = vunpack.c.l.b16 %v2281
    %v2326 = vunpack.c.l.b16 %v2282
    %v2327 = vunpack.c.l.b16 %v2283
    %v2328 = vunpack.c.l.b16 %v2284
    %v2329 = vunpack.c.l.b16 %v2285
    %v2330 = vunpack.c.l.b16 %v2286
    %v2331 = vunpack.c.l.b16 %v2287
    %v2332 = vunpack.c.l.b16 %v2288
    %v2333 = vunpack.c.l.b16 %v2289
    %v2334 = vpack.c.b16 %v2319, %v2318
    %v2335 = vpack.c.b16 %v2321, %v2320
    %v2336 = vpack.c.b16 %v2323, %v2322
    %v2337 = vpack.c.b16 %v2325, %v2324
    %v2338 = vpack.c.b16 %v2327, %v2326
    %v2339 = vpack.c.b16 %v2329, %v2328
    %v2340 = vpack.c.b16 %v2331, %v2330
    %v2341 = vpack.c.b16 %v2333, %v2332
    %2350 = vmatpush.bf16.msra.mxu0 %v2341
    %2351 = vmatpush.bf16.msra.mxu0 %v2340
    %2352 = vmatpush.bf16.msra.mxu0 %v2339
    %2353 = vmatpush.bf16.msra.mxu0 %v2338
    %2354 = vmatpush.bf16.msra.mxu0 %v2337
    %2355 = vmatpush.bf16.msra.mxu0 %v2336
    %2356 = vmatpush.bf16.msra.mxu0 %v2335
    %2357 = vmatpush.bf16.msra.mxu0 %v2334
    %2358 = vmatmul.bf16.gmra.mxu0 %v2298
    %v2359 = vpop.f32.mrf.mxu0
    %v2360 = vadd.f32 0.0, %v2359
    %v2361 = vpop.f32.mrf.mxu0
    %v2362 = vadd.f32 0.0, %v2361
    %2363 = vmatmul.bf16.gmra.mxu0 %v2299
    %v2364 = vpop.f32.mrf.mxu0
    %v2365 = vadd.f32 0.0, %v2364
    %v2366 = vpop.f32.mrf.mxu0
    %v2367 = vadd.f32 0.0, %v2366
    %2368 = vdwg.mxu0
    %v2369 = vadd.f32 %v2360, %v2362
    %v2370 = vadd.f32 %v2369, %v2365
    %v2371 = vadd.f32 %v2370, %v2367
    %v2372 = vrot.slane %v2371, 4
    %v2373 = vadd.f32 %v2371, %v2372
    %v2374 = vrot.slane %v2373, 2
    %v2375 = vadd.f32 %v2373, %v2374
    %v2376 = vrot.slane %v2375, 1
    %v2377 = vadd.f32 %v2375, %v2376
    %v2378 = vmul.f32 %v2377, 0.03125
    %v2379 = vmul.f32 %v2360, %v2360
    %v2380 = vmul.f32 %v2362, %v2362
    %v2381 = vmul.f32 %v2365, %v2365
    %v2382 = vmul.f32 %v2367, %v2367
    %v2383 = vadd.f32 %v2379, %v2380
    %v2384 = vadd.f32 %v2383, %v2381
    %v2385 = vadd.f32 %v2384, %v2382
    %v2386 = vrot.slane %v2385, 4
    %v2387 = vadd.f32 %v2385, %v2386
    %v2388 = vrot.slane %v2387, 2
    %v2389 = vadd.f32 %v2387, %v2388
    %v2390 = vrot.slane %v2389, 1
    %v2391 = vadd.f32 %v2389, %v2390
    %v2392 = vmul.f32 %v2391, 0.03125
    %v2393 = vmul.f32 %v2378, %v2378
    %v2394 = vsub.f32 %v2392, %v2393
    %v2395 = vmax.f32 %v2394, 0.0
    %v2396 = vld [vmem:[%s11] sm:$0x1]
    %v2397 = vadd.f32 %v2395, 1e-05
    %v2398 = vrsqrt.pop %v2397
    %v2399 = vmul.f32 %v2398, %v2397
    %v2400 = vmul.f32 %v2399, %v2398
    %v2401 = vmul.f32 0.5, %v2400
    %v2402 = vsub.f32 1.5, %v2401
    %v2403 = vmul.f32 %v2398, %v2402
    %vm2404 = vweird.f32 %v2397
    %vm2405 = vweird.f32 %v2398
    %vm2406 = vmor %vm2404, %vm2405
    %v2407 = vsel %vm2406, %v2398, %v2403
    %v2408 = vmul.f32 %v2396, %v2407
    %v2409 = vld [vmem:[%s12] sm:$0x1]
    %v2410 = vmul.f32 %v2378, %v2408
    %v2411 = vsub.f32 %v2409, %v2410
    %v2413 = vperm.slane %v2408, 0
    %v2415 = vmul.f32 %v2360, %v2413
    %v2416 = vmul.f32 %v2362, %v2413
    %v2417 = vmul.f32 %v2365, %v2413
    %v2418 = vmul.f32 %v2367, %v2413
    %v2420 = vperm.slane %v2411, 0
    %v2422 = vadd.f32 %v2415, %v2420
    %v2423 = vadd.f32 %v2416, %v2420
    %v2424 = vadd.f32 %v2417, %v2420
    %v2425 = vadd.f32 %v2418, %v2420
    %v2426 = vadd.f32 %v2270, %v2422
    %v2427 = vadd.f32 %v2271, %v2423
    %v2428 = vadd.f32 %v2272, %v2424
    %v2429 = vadd.f32 %v2273, %v2425
    %v2430 = vmax.f32 %v2426, 0.0
    %v2431 = vmax.f32 %v2427, 0.0
    %v2432 = vmax.f32 %v2428, 0.0
    %v2433 = vmax.f32 %v2429, 0.0
    %2434 = vst [vmem:[#allocation12] sm:$0xff] %v2430
    %2435 = vst [vmem:[#allocation12 + $0x8] sm:$0xff] %v2431
    %2436 = vst [vmem:[#allocation12 + $0x10] sm:$0xff] %v2432
    %2437 = vst [vmem:[#allocation12 + $0x18] sm:$0xff] %v2433
    // Predicated region
    $region74: #{tpu_custom_call.1} parent=1 // pred_check
      _
    $region75: #{tpu_custom_call.1} parent=1 // pred_check_branch
      %2439 = sbr.rel (0) target = $region77
    $region76: #{tpu_custom_call.1} parent=1 // pred_region
      %2441 = vsyncadd [#allocation5], 0
      %s2442 = sshll.u32 [#allocation12], 4
      %s2443 = int_to_ptr.vmem [resolvable:$true] %s2442
      %s2444 = sshll.u32 %s13, 4
      %s2445 = int_to_ptr.hbm [resolvable:$true] %s2444
      %2450 = dma.vmem_to_hbm [thread:$0]  %s2443, 512, %s2445, [#allocation5], 128, 128, 8
    $region77: #{tpu_custom_call.1} parent=1 // pred_fallthru
      _
    // Predicated region
    $region78: #{tpu_custom_call.1} parent=1 // pred_check
      _
    $region79: #{tpu_custom_call.1} parent=1 // pred_check_branch
      %2452 = sbr.rel (0) target = $region81
    $region80: #{tpu_custom_call.1} parent=1 // pred_region
      %2454 = dma.done [#allocation5], 512
    $region81: #{tpu_custom_call.1} parent=1 // pred_fallthru
      _
    %2455 = vsyncpa [#allocation4], 1
    %2456 = vsyncpa [#allocation7], 1
    %2457 = vsyncpa [#allocation10], 1
    %2458 = vsyncpa [#allocation5], 1

</llo_original>
